<compile_context>
chip_gen: v6e
topology: v6e:2x2x1
jax: 0.10.0
libtpu: 0.0.40
codegen_flags: <defaults>
</compile_context>

<pallas_src>
import functools
import math

import jax
import jax.numpy as jnp
from jax.experimental import pallas as pl
from jax.experimental.pallas import tpu as pltpu


def _round_up(n, m):
    return ((n + m - 1) // m) * m


def _cdiv(a, b):
    return -(-a // b)


_VMEM_SOFT_CAP = 40 * 1024 * 1024     # streamed double-buffer budget (safe on v5e/v6e/v7x)
_VMEM_RAISE_THRESHOLD = 12 * 1024 * 1024
_VMEM_LIMIT_CAP = 48 * 1024 * 1024    # never request more than this (v7x physical is 64 MiB)


def model_laplace_kernel(x_ref, c_ref, w_enc_ref, w_heads_ref, sel_ref, w_dec_ref,
                         b_dec_ref, zr_ref, o_ref, *, latent_pad):
    P = latent_pad

    # encoder: h1 = relu(x @ W_enc1^T)   (f32 accumulation on the MXU)
    h1 = jnp.maximum(
        jnp.dot(x_ref[...], w_enc_ref[...], preferred_element_type=jnp.float32), 0.0)
    h1 = h1.astype(w_heads_ref.dtype)

    # single fused, lane-dense head matmul: result = [m | r | 0 ...] ++ [v_pre | 0 ...]
    heads = jnp.dot(h1, w_heads_ref[...], preferred_element_type=jnp.float32)
    a = heads[:, :P]       # lanes 0:L = m, lane L = r, rest 0      (128-aligned slice)
    v_pre = heads[:, P:]   # lanes 0:L = v_pre, rest 0              (128-aligned slice)

    # softplus (PyTorch threshold=20) with overflow-safe clamp inside the untaken branch
    v = jnp.where(v_pre > 20.0, v_pre,
                  jnp.log1p(jnp.exp(jnp.minimum(v_pre, 20.0))))

    # Lane-extend c (tile_b, L) -> (tile_b, P) via a tiny identity-selector matmul on the
    # otherwise-idle MXU: avoids shipping P-L zero lanes per row over HBM.
    c_ext = jnp.dot(c_ref[...], sel_ref[...], preferred_element_type=jnp.float32)

    # Laplace(m, v).rsample(): z = m - v * c.  Lanes >= L have c_ext == 0, so the r / zero
    # lanes pass through untouched -> packed = [z | r | 0 ...], one full-width store.
    packed = a - v * c_ext

    # decoder: o = sigmoid(z @ W_dec^T + b).  W_dec^T is K-zero-padded to P rows, so the
    # packed [z | r | 0] slab is fed straight to the MXU (r multiplies a zero row).
    logits = (jnp.dot(packed.astype(w_dec_ref.dtype), w_dec_ref[...],
                      preferred_element_type=jnp.float32) + b_dec_ref[...])
    # exp and the approximate reciprocal both land on the EUP slot (VALU stays free)
    o = pl.reciprocal(1.0 + jnp.exp(-logits), approx=True)

    zr_ref[...] = packed.astype(zr_ref.dtype)
    o_ref[...] = o.astype(o_ref.dtype)


def pack_params(w_enc1, w_m, w_v, w_r, w_dec, b_dec, *, mxu_dtype=jnp.float32):
    """One-time repack of PyTorch-layout weights into the kernel layout.

    mxu_dtype=jnp.bfloat16 is the v6e/v7x option: halves weight/x HBM bytes and uses the
    bf16-native MXU (f32 accumulation is kept in-kernel).  Default f32 = exact parity.
    """
    H, F_in = w_enc1.shape
    L = w_m.shape[0]
    P = _round_up(L + 1, 128)                      # lane-dense head / packed-output width

    w_enc_t = jnp.asarray(w_enc1, jnp.float32).T.astype(mxu_dtype)   # (F_in, H)

    # fused head weight (H, 2P): [ W_m^T | W_r^T | 0 ...  ||  W_v^T | 0 ... ]
    w_heads = jnp.zeros((H, 2 * P), jnp.float32)
    w_heads = w_heads.at[:, :L].set(jnp.asarray(w_m, jnp.float32).T)
    w_heads = w_heads.at[:, L:L + 1].set(jnp.asarray(w_r, jnp.float32).T)
    w_heads = w_heads.at[:, P:P + L].set(jnp.asarray(w_v, jnp.float32).T)
    w_heads = w_heads.astype(mxu_dtype)

    # decoder weight, K-padded to P rows so the packed [z | r | 0] slab can be used directly
    w_dec_pad = jnp.zeros((P, F_in), jnp.float32)
    w_dec_pad = w_dec_pad.at[:L, :].set(jnp.asarray(w_dec, jnp.float32).T)
    w_dec_pad = w_dec_pad.astype(mxu_dtype)

    # lane-extension selector (L, P): c_ext = c @ sel, sel = [I_L | 0].  Kept f32 (exact).
    sel = jnp.zeros((L, P), jnp.float32).at[:, :L].set(jnp.eye(L, dtype=jnp.float32))

    b_dec_2d = jnp.asarray(b_dec, jnp.float32).reshape(1, F_in)
    return dict(w_enc_t=w_enc_t, w_heads=w_heads, w_dec_pad=w_dec_pad, sel=sel,
                b_dec=b_dec_2d, H=int(H), F_in=int(F_in), L=int(L), P=int(P))


def _choose_tiling(B, bytes_per_row, *, max_tile, vmem_cap):
    """Largest batch tile (multiple of 8) that keeps an even grid >= 2 (v7x megacore) and
    a double-buffered streamed footprint under vmem_cap."""
    tile = max(8, min(max_tile, _round_up(max(B // 2, 1), 8)))
    while tile > 8 and 2 * tile * bytes_per_row > vmem_cap:
        tile = max(8, _round_up(tile // 2, 8))
    nb = max(2, _cdiv(B, tile))
    if nb % 2:
        nb += 1                                   # even grid -> balanced across 2 TCs
    tile = max(8, _round_up(_cdiv(B, nb), 8))     # rebalance so padding is minimal
    return tile, nb


def model_laplace_forward(x, u, params, *, max_tile_b=1024, out_dtype=jnp.float32):
    """x: (B, F_in); u: (B, L) Laplace-rsample uniform noise; params from pack_params.

    Returns (zr, o):
      zr: (Bp, P) lane-dense packed slab [z | r | 0...]  (use unpack_zr to slice lazily)
      o : (Bp, F_in) decoder sigmoid output
    Bp >= B is the batch padded to a whole number of tiles.
    """
    H, F_in, L, P = params["H"], params["F_in"], params["L"], params["P"]
    mxu_dtype = params["w_enc_t"].dtype
    B = x.shape[0]

    x = jnp.asarray(x, jnp.float32)
    u = jnp.asarray(u, jnp.float32)
    # Precompute c = sign(u)*log1p(-|u|) at natural width L: fuses with RNG, removes one
    # log1p/tile from the EUP, and avoids shipping (P-L) zero lanes per row over HBM.
    c = jnp.sign(u) * jnp.log1p(-jnp.abs(u))

    in_bytes = jnp.dtype(mxu_dtype).itemsize
    out_bytes = jnp.dtype(out_dtype).itemsize
    bytes_per_row = F_in * in_bytes + L * 4 + P * out_bytes + F_in * out_bytes
    weight_bytes = ((F_in * H + H * 2 * P + P * F_in) * in_bytes
                    + L * P * 4 + F_in * 4)

    tile_b, nb = _choose_tiling(
        B, bytes_per_row, max_tile=max_tile_b,
        vmem_cap=max(_VMEM_SOFT_CAP - 2 * weight_bytes, 4 * 1024 * 1024))
    Bp = tile_b * nb

    if Bp != B:                                   # pad batch to a whole number of tiles
        x = jnp.pad(x, ((0, Bp - B), (0, 0)))
        c = jnp.pad(c, ((0, Bp - B), (0, 0)))
    x = x.astype(mxu_dtype)

    # Scoped-VMEM limit: only raised when large tiles need it (v5e default is ~16 MiB),
    # capped well under v7x's 64 MiB physical per-TC budget.
    vmem_est = 2 * tile_b * bytes_per_row + 2 * weight_bytes + (2 << 20)
    cp_kwargs = dict(dimension_semantics=("parallel",))
    if vmem_est > _VMEM_RAISE_THRESHOLD:
        cp_kwargs["vmem_limit_bytes"] = int(min(_VMEM_LIMIT_CAP, vmem_est + (4 << 20)))

    kernel = functools.partial(model_laplace_kernel, latent_pad=P)

    flops = 2 * Bp * (F_in * H + H * 2 * P + L * P + P * F_in)
    transcendentals = Bp * (2 * P + 2 * F_in)
    bytes_accessed = (Bp * F_in * in_bytes + Bp * L * 4      # x, c
                      + weight_bytes                          # weights + selector + bias
                      + Bp * (P + F_in) * out_bytes)          # outputs

    zr, o = pl.pallas_call(
        kernel,
        grid=(nb,),
        in_specs=[
            pl.BlockSpec((tile_b, F_in), lambda i: (i, 0)),   # x tile
            pl.BlockSpec((tile_b, L), lambda i: (i, 0)),      # c tile (natural width L)
            pl.BlockSpec((F_in, H), lambda i: (0, 0)),        # weights: VMEM-resident
            pl.BlockSpec((H, 2 * P), lambda i: (0, 0)),
            pl.BlockSpec((L, P), lambda i: (0, 0)),           # lane-extension selector
            pl.BlockSpec((P, F_in), lambda i: (0, 0)),
            pl.BlockSpec((1, F_in), lambda i: (0, 0)),
        ],
        out_specs=(
            pl.BlockSpec((tile_b, P), lambda i: (i, 0)),      # packed [z | r | 0] (lane-dense)
            pl.BlockSpec((tile_b, F_in), lambda i: (i, 0)),   # o
        ),
        out_shape=(
            jax.ShapeDtypeStruct((Bp, P), out_dtype),
            jax.ShapeDtypeStruct((Bp, F_in), out_dtype),
        ),
        compiler_params=pltpu.CompilerParams(**cp_kwargs),
        cost_estimate=pl.CostEstimate(
            flops=flops, transcendentals=transcendentals,
            bytes_accessed=bytes_accessed),
    )(x, c, params["w_enc_t"], params["w_heads"], params["sel"],
      params["w_dec_pad"], params["b_dec"])

    return zr, o


def unpack_zr(zr, latent_features, batch=None):
    """Materialize z and r from the packed [z | r | 0] slab (only call when needed)."""
    b = zr.shape[0] if batch is None else batch
    z = zr[:b, :latent_features]
    r = zr[:b, latent_features:latent_features + 1]
    return z, r


def reference_forward(x, w_enc1, w_m, w_v, w_r, w_dec, b_dec, u):
    h1 = jnp.maximum(x @ w_enc1.T, 0.0)
    m = h1 @ w_m.T
    v_pre = h1 @ w_v.T
    v = jnp.where(v_pre > 20.0, v_pre, jnp.log1p(jnp.exp(v_pre)))
    z = m - v * jnp.sign(u) * jnp.log1p(-jnp.abs(u))
    r = h1 @ w_r.T
    o = jax.nn.sigmoid(z @ w_dec.T + b_dec[None, :])
    return z, o, r


if __name__ == "__main__":
    # small shapes consistent with the module: Linear(F_in->H), (H->L), (H->1), (L->F_in)
    B, F_in, H, L = 256, 128, 32, 32

    key = jax.random.PRNGKey(0)
    kx, k1, k2, k3, k4, k5, k6, ku = jax.random.split(key, 8)

    x = jax.random.normal(kx, (B, F_in), dtype=jnp.float32)

    # deterministic PyTorch-like init: U(-1/sqrt(fan_in), 1/sqrt(fan_in))
    def init(k, shape, fan_in):
        bound = 1.0 / math.sqrt(float(fan_in))
        return jax.random.uniform(k, shape, jnp.float32, -bound, bound)

    w_enc1 = init(k1, (H, F_in), F_in)    # affine_enc1.weight
    w_m = init(k2, (L, H), H)             # affine_m.weight
    w_v = init(k3, (L, H), H)             # affine_v.weight
    w_r = init(k4, (1, H), H)             # affine_r.weight
    w_dec = init(k5, (F_in, L), L)        # affine_dec.weight
    b_dec = init(k6, (F_in,), L)          # affine_dec.bias

    # Laplace rsample noise: u ~ Uniform(eps - 1, 1), eps = float32 machine epsilon
    eps = float(jnp.finfo(jnp.float32).eps)
    u = jax.random.uniform(ku, (B, L), jnp.float32, minval=eps - 1.0, maxval=1.0)

    z_ref, o_ref, r_ref = reference_forward(x, w_enc1, w_m, w_v, w_r, w_dec, b_dec, u)

    # ---- f32 path (exact parity with the PyTorch module semantics) ----
    params = pack_params(w_enc1, w_m, w_v, w_r, w_dec, b_dec)        # one-time repack
    zr, o = model_laplace_forward(x, u, params, max_tile_b=1024)
    jax.block_until_ready((zr, o))
    z, r = unpack_zr(zr, L, batch=B)
    o_b = o[:B]
    assert jnp.allclose(z, z_ref, atol=1e-5, rtol=1e-5), "z mismatch (f32)"
    assert jnp.allclose(r, r_ref, atol=1e-5, rtol=1e-5), "r mismatch (f32)"
    # approx-EUP reciprocal in the sigmoid -> slightly looser tolerance on o
    assert jnp.allclose(o_b, o_ref, atol=5e-3, rtol=5e-3), "o mismatch (f32)"

    # ---- bf16 MXU-input path (v6e/v7x suggestion; f32 accumulation kept) ----
    params_bf16 = pack_params(w_enc1, w_m, w_v, w_r, w_dec, b_dec,
                              mxu_dtype=jnp.bfloat16)
    zr16, o16 = model_laplace_forward(x, u, params_bf16, max_tile_b=1024)
    jax.block_until_ready((zr16, o16))
    z16, r16 = unpack_zr(zr16, L, batch=B)
    assert jnp.allclose(z16, z_ref, atol=5e-2, rtol=5e-2), "z mismatch (bf16)"
    assert jnp.allclose(r16, r_ref, atol=5e-2, rtol=5e-2), "r mismatch (bf16)"
    assert jnp.allclose(o16[:B], o_ref, atol=5e-2, rtol=5e-2), "o mismatch (bf16)"

    print("KERNEL_OK")
</pallas_src>

<mosaic_0001>
module attributes {stable_mosaic.version = 11 : i64} {
  func.func @model_laplace_kernel(%arg0: i32, %arg1: memref<128x128xf32, #tpu.memory_space<vmem>>, %arg2: memref<128x32xf32, #tpu.memory_space<vmem>>, %arg3: memref<128x32xf32, #tpu.memory_space<vmem>>, %arg4: memref<32x256xf32, #tpu.memory_space<vmem>>, %arg5: memref<32x128xf32, #tpu.memory_space<vmem>>, %arg6: memref<128x128xf32, #tpu.memory_space<vmem>>, %arg7: memref<1x128xf32, #tpu.memory_space<vmem>>, %arg8: memref<128x128xf32, #tpu.memory_space<vmem>>, %arg9: memref<128x128xf32, #tpu.memory_space<vmem>>) attributes {dimension_semantics = [#tpu.dimension_semantics<parallel>], iteration_bounds = array<i64: 2>, scalar_prefetch = 0 : i64, scratch_operands = 0 : i64, tpu.core_type = #tpu.core_type<tc>, window_params = [{transform_indices = @transform_0, window_bounds = array<i64: 128, 128>}, {transform_indices = @transform_1, window_bounds = array<i64: 128, 32>}, {pipeline_mode = #tpu.pipeline_mode<synchronous>, transform_indices = @transform_2, window_bounds = array<i64: 128, 32>}, {pipeline_mode = #tpu.pipeline_mode<synchronous>, transform_indices = @transform_3, window_bounds = array<i64: 32, 256>}, {pipeline_mode = #tpu.pipeline_mode<synchronous>, transform_indices = @transform_4, window_bounds = array<i64: 32, 128>}, {pipeline_mode = #tpu.pipeline_mode<synchronous>, transform_indices = @transform_5, window_bounds = array<i64: 128, 128>}, {pipeline_mode = #tpu.pipeline_mode<synchronous>, transform_indices = @transform_6, window_bounds = array<i64: 1, 128>}, {transform_indices = @transform_7, window_bounds = array<i64: 128, 128>}, {transform_indices = @transform_8, window_bounds = array<i64: 128, 128>}]} {
    %c0 = arith.constant 0 : index
    %c0_0 = arith.constant 0 : index
    %0 = vector.load %arg1[%c0, %c0_0] : memref<128x128xf32, #tpu.memory_space<vmem>>, vector<128x128xf32>
    %c0_1 = arith.constant 0 : index
    %c0_2 = arith.constant 0 : index
    %1 = vector.load %arg3[%c0_1, %c0_2] : memref<128x32xf32, #tpu.memory_space<vmem>>, vector<128x32xf32>
    %cst = arith.constant dense<0.000000e+00> : vector<128x32xf32>
    %2 = tpu.matmul %0, %1, %cst {dimension_numbers = #tpu.dot_dimension_numbers<[1], [0], [0], [1], [0, 0, 1, 1], [], []>} : vector<128x128xf32>, vector<128x32xf32>, vector<128x32xf32> -> vector<128x32xf32>
    %cst_3 = arith.constant 0.000000e+00 : f32
    %3 = vector.broadcast %cst_3 : f32 to vector<128x32xf32>
    %4 = arith.maximumf %2, %3 : vector<128x32xf32>
    %c0_4 = arith.constant 0 : index
    %c0_5 = arith.constant 0 : index
    %5 = vector.load %arg4[%c0_4, %c0_5] : memref<32x256xf32, #tpu.memory_space<vmem>>, vector<32x256xf32>
    %cst_6 = arith.constant dense<0.000000e+00> : vector<128x256xf32>
    %6 = tpu.matmul %4, %5, %cst_6 {dimension_numbers = #tpu.dot_dimension_numbers<[1], [0], [0], [1], [0, 0, 1, 1], [], []>} : vector<128x32xf32>, vector<32x256xf32>, vector<128x256xf32> -> vector<128x256xf32>
    %7 = vector.extract_strided_slice %6 {offsets = [0, 0], sizes = [128, 128], strides = [1, 1]} : vector<128x256xf32> to vector<128x128xf32>
    %8 = vector.extract_strided_slice %6 {offsets = [0, 128], sizes = [128, 128], strides = [1, 1]} : vector<128x256xf32> to vector<128x128xf32>
    %cst_7 = arith.constant 2.000000e+01 : f32
    %9 = vector.broadcast %cst_7 : f32 to vector<128x128xf32>
    %10 = arith.cmpf ogt, %8, %9 : vector<128x128xf32>
    %cst_8 = arith.constant 2.000000e+01 : f32
    %11 = vector.broadcast %cst_8 : f32 to vector<128x128xf32>
    %12 = arith.minimumf %8, %11 : vector<128x128xf32>
    %13 = math.exp %12 : vector<128x128xf32>
    %14 = math.log1p %13 : vector<128x128xf32>
    %15 = arith.select %10, %8, %14 : vector<128x128xi1>, vector<128x128xf32>
    %c0_9 = arith.constant 0 : index
    %c0_10 = arith.constant 0 : index
    %16 = vector.load %arg2[%c0_9, %c0_10] : memref<128x32xf32, #tpu.memory_space<vmem>>, vector<128x32xf32>
    %c0_11 = arith.constant 0 : index
    %c0_12 = arith.constant 0 : index
    %17 = vector.load %arg5[%c0_11, %c0_12] : memref<32x128xf32, #tpu.memory_space<vmem>>, vector<32x128xf32>
    %cst_13 = arith.constant dense<0.000000e+00> : vector<128x128xf32>
    %18 = tpu.matmul %16, %17, %cst_13 {dimension_numbers = #tpu.dot_dimension_numbers<[1], [0], [0], [1], [0, 0, 1, 1], [], []>} : vector<128x32xf32>, vector<32x128xf32>, vector<128x128xf32> -> vector<128x128xf32>
    %19 = arith.mulf %15, %18 : vector<128x128xf32>
    %20 = arith.subf %7, %19 : vector<128x128xf32>
    %c0_14 = arith.constant 0 : index
    %c0_15 = arith.constant 0 : index
    %21 = vector.load %arg6[%c0_14, %c0_15] : memref<128x128xf32, #tpu.memory_space<vmem>>, vector<128x128xf32>
    %cst_16 = arith.constant dense<0.000000e+00> : vector<128x128xf32>
    %22 = tpu.matmul %20, %21, %cst_16 {dimension_numbers = #tpu.dot_dimension_numbers<[1], [0], [0], [1], [0, 0, 1, 1], [], []>} : vector<128x128xf32>, vector<128x128xf32>, vector<128x128xf32> -> vector<128x128xf32>
    %c0_17 = arith.constant 0 : index
    %c0_18 = arith.constant 0 : index
    %23 = vector.load %arg7[%c0_17, %c0_18] : memref<1x128xf32, #tpu.memory_space<vmem>>, vector<1x128xf32>
    %24 = vector.broadcast %23 : vector<1x128xf32> to vector<128x128xf32>
    %25 = arith.addf %22, %24 : vector<128x128xf32>
    %cst_19 = arith.constant 0.000000e+00 : f32
    %26 = vector.broadcast %cst_19 : f32 to vector<128x128xf32>
    %27 = arith.subf %26, %25 : vector<128x128xf32>
    %28 = math.exp %27 : vector<128x128xf32>
    %cst_20 = arith.constant 1.000000e+00 : f32
    %29 = vector.broadcast %cst_20 : f32 to vector<128x128xf32>
    %30 = arith.addf %29, %28 : vector<128x128xf32>
    %31 = tpu.reciprocal %30 {approx = true} : vector<128x128xf32> -> vector<128x128xf32>
    %c0_21 = arith.constant 0 : index
    %c0_22 = arith.constant 0 : index
    %32 = vector.load %arg8[%c0_21, %c0_22] : memref<128x128xf32, #tpu.memory_space<vmem>>, vector<128x128xf32>
    tpu.vector_store %arg8[%c0_21, %c0_22], %20 {strides = array<i32>} : memref<128x128xf32, #tpu.memory_space<vmem>>, vector<128x128xf32>,
    %c0_23 = arith.constant 0 : index
    %c0_24 = arith.constant 0 : index
    %33 = vector.load %arg9[%c0_23, %c0_24] : memref<128x128xf32, #tpu.memory_space<vmem>>, vector<128x128xf32>
    tpu.vector_store %arg9[%c0_23, %c0_24], %31 {strides = array<i32>} : memref<128x128xf32, #tpu.memory_space<vmem>>, vector<128x128xf32>,
    return
  }
  func.func @transform_0(%arg0: i32) -> (i32, i32) {
    %c0_i32 = arith.constant 0 : i32
    %c0_i32_0 = arith.constant 0 : i32
    return %arg0, %c0_i32 : i32, i32
  }
  func.func @transform_1(%arg0: i32) -> (i32, i32) {
    %c0_i32 = arith.constant 0 : i32
    %c0_i32_0 = arith.constant 0 : i32
    return %arg0, %c0_i32 : i32, i32
  }
  func.func @transform_2(%arg0: i32) -> (i32, i32) {
    %c0_i32 = arith.constant 0 : i32
    %c0_i32_0 = arith.constant 0 : i32
    %c0_i32_1 = arith.constant 0 : i32
    return %c0_i32, %c0_i32_0 : i32, i32
  }
  func.func @transform_3(%arg0: i32) -> (i32, i32) {
    %c0_i32 = arith.constant 0 : i32
    %c0_i32_0 = arith.constant 0 : i32
    %c0_i32_1 = arith.constant 0 : i32
    return %c0_i32, %c0_i32_0 : i32, i32
  }
  func.func @transform_4(%arg0: i32) -> (i32, i32) {
    %c0_i32 = arith.constant 0 : i32
    %c0_i32_0 = arith.constant 0 : i32
    %c0_i32_1 = arith.constant 0 : i32
    return %c0_i32, %c0_i32_0 : i32, i32
  }
  func.func @transform_5(%arg0: i32) -> (i32, i32) {
    %c0_i32 = arith.constant 0 : i32
    %c0_i32_0 = arith.constant 0 : i32
    %c0_i32_1 = arith.constant 0 : i32
    return %c0_i32, %c0_i32_0 : i32, i32
  }
  func.func @transform_6(%arg0: i32) -> (i32, i32) {
    %c0_i32 = arith.constant 0 : i32
    %c0_i32_0 = arith.constant 0 : i32
    %c0_i32_1 = arith.constant 0 : i32
    return %c0_i32, %c0_i32_0 : i32, i32
  }
  func.func @transform_7(%arg0: i32) -> (i32, i32) {
    %c0_i32 = arith.constant 0 : i32
    %c0_i32_0 = arith.constant 0 : i32
    return %arg0, %c0_i32 : i32, i32
  }
  func.func @transform_8(%arg0: i32) -> (i32, i32) {
    %c0_i32 = arith.constant 0 : i32
    %c0_i32_0 = arith.constant 0 : i32
    return %arg0, %c0_i32 : i32, i32
  }
}

</mosaic_0001>

<llo_original>
// kernel: tpu_custom_call.1
$region0: #{tpu_custom_call.1}
  #allocation0 [shape = 'u32[]', space=smem, size = 0x4, offset = 0x4, fixed_abs, tag = 'smem constant byte address 0x4 - core index']
  #allocation1 [shape = 'u32[144,128]{1,0:T(1,128)}', space=vmem, size = 0x12000, scoped, tag = 'internal scratch']
  %s0 = inlined_call_operand.vmem [shape: f32[256,128], index: 0, kind: input, shape index: {}]
  %s1 = inlined_call_operand.vmem [shape: f32[256,32], index: 1, kind: input, shape index: {}]
  %s2 = inlined_call_operand.vmem [shape: f32[128,32], index: 2, kind: input, shape index: {}]
  %s3 = inlined_call_operand.hbm [shape: f32[32,256], index: 3, kind: input, shape index: {}]
  %s4 = inlined_call_operand.vmem [shape: f32[32,128], index: 4, kind: input, shape index: {}]
  %s5 = inlined_call_operand.vmem [shape: f32[128,128], index: 5, kind: input, shape index: {}]
  %s6 = inlined_call_operand.vmem [shape: f32[1,128], index: 6, kind: input, shape index: {}]
  %s7 = inlined_call_operand.hbm [shape: f32[256,128], index: 7, kind: output, shape index: {0}]
  %s8 = inlined_call_operand.hbm [shape: f32[256,128], index: 8, kind: output, shape index: {1}]
  %9 = xla_tuple %s7, %s8
  %s10 = sld [smem:[#allocation0]]
  $region73: #{tpu_custom_call.1} parent=0
    _
  %s12 = ssub.s32 1, %s10
  %s13 = scalar_select 0, %s12, %s10
  $region1: #{tpu_custom_call.1} parent=0
    #allocation2 [shape = 'u8[32768]{0}', space=vmem, size = 0x8000, scoped, tag = 'input window, operand 3, single buffered']
    #allocation3 [shape = 's32[2]{0}', space=sflag, size = 0x8, scoped, tag = 'scoped memory for tpu_custom_call.1']
    #allocation4 [shape = 's32[2]{0}', space=sflag, size = 0x8, scoped, tag = 'scoped memory for tpu_custom_call.1']
    #allocation5 [shape = 'u8[131072]{0}', space=vmem, size = 0x20000, scoped, tag = 'output window, operand 0']
    #allocation6 [shape = 'u8[131072]{0}', space=vmem, size = 0x20000, scoped, tag = 'output window, operand 1']
    #allocation7 [shape = 's32[2]{0}', space=sflag, size = 0x8, scoped, tag = 'scoped memory for tpu_custom_call.1']
    %14 = vsyncpa [#allocation3], 0
    %15 = vsyncpa [#allocation4], 0
    %s16 = scalar_lea.sflag [#allocation4], 1
    %17 = vsyncpa %s16, 0
    %18 = vsyncpa [#allocation7], 0
    %s19 = scalar_lea.sflag [#allocation7], 1
    %20 = vsyncpa %s19, 0
    loop: start=0, step=1, limit=4
    $region2: #{tpu_custom_call.1} parent=1 // loop_pre_header
      _
    $region3: #{tpu_custom_call.1} parent=1 // loop_header
      %s22 = sphi 0, %s26
      %p23 = scmp.ge.s32.totalorder %s22, 4
      %s32 = sphi 0, %s34
      %s35 = sphi 0, %s32
      %s36 = sphi 0, %s35
      %s52 = sphi 0, %s36
      %s58 = sphi 0, %s60
      %s61 = sphi 0, %s58
      %s62 = sphi 0, %s61
      %s78 = sphi 0, %s62
      %s82 = sphi 0, %s82
      %s84 = sphi 0, %s82
      %s85 = sphi 0, %s84
      %s99 = sphi 0, %s85
      %s103 = sphi 0, %s103
      %s105 = sphi 0, %s103
      %s106 = sphi 0, %s105
      %s120 = sphi 0, %s106
      %s124 = sphi 0, %s124
      %s126 = sphi 0, %s124
      %s127 = sphi 0, %s126
      %s141 = sphi 0, %s127
      %s145 = sphi 0, %s145
      %s147 = sphi 0, %s145
      %s148 = sphi 0, %s147
      %s162 = sphi 0, %s148
      %s166 = sphi 0, %s166
      %s168 = sphi 0, %s166
      %s169 = sphi 0, %s168
      %s183 = sphi 0, %s169
      %s189 = sphi 0, %s191
      %s192 = sphi 0, %s189
      %s193 = sphi 0, %s192
      %s209 = sphi 0, %s193
      %s215 = sphi 0, %s217
      %s218 = sphi 0, %s215
      %s219 = sphi 0, %s218
      %s235 = sphi 0, %s219
    $region4: #{tpu_custom_call.1} parent=1 // loop_header_branch
      %25 = sbr.rel (%p23) target = $region8
    $region5: #{tpu_custom_call.1} parent=1 // loop_body
      %s27 = ssub.s32 %s22, 1
      %s28 = ssub.s32 %s22, 2
      %s29 = sadd.s32 %s22, 1
      %s30 = ssub.s32 %s22, %s29
      %p31 = scmp.eq.s32.totalorder %s30, 0
      %s33 = sadd.s32 %s32, 1
      %s34 = scalar_select %p31, %s32, %s33
      %p37 = pneg %p31
      %p38 = scmp.eq.s32.totalorder %s22, 1
      %p39 = por %p37, %p38
      %p40 = scmp.ne.s32.totalorder %s32, %s35
      %p41 = scmp.eq.s32.totalorder %s22, 0
      %p42 = por %p40, %p41
      %p43 = scmp.ne.s32.totalorder %s32, %s35
      %p44 = scmp.eq.s32.totalorder %s27, 1
      %p45 = por %p43, %p44
      %p46 = scmp.ne.s32.totalorder %s35, %s36
      %p47 = scmp.eq.s32.totalorder %s27, 0
      %p48 = por %p46, %p47
      %p49 = scmp.ne.s32.totalorder %s35, %s36
      %p50 = scmp.eq.s32.totalorder %s28, 1
      %p51 = por %p49, %p50
      %p53 = scmp.ne.s32.totalorder %s36, %s52
      %p54 = scmp.eq.s32.totalorder %s28, 0
      %p55 = por %p53, %p54
      %s56 = ssub.s32 %s22, %s29
      %p57 = scmp.eq.s32.totalorder %s56, 0
      %s59 = sadd.s32 %s58, 1
      %s60 = scalar_select %p57, %s58, %s59
      %p63 = pneg %p57
      %p64 = scmp.eq.s32.totalorder %s22, 1
      %p65 = por %p63, %p64
      %p66 = scmp.ne.s32.totalorder %s58, %s61
      %p67 = scmp.eq.s32.totalorder %s22, 0
      %p68 = por %p66, %p67
      %p69 = scmp.ne.s32.totalorder %s58, %s61
      %p70 = scmp.eq.s32.totalorder %s27, 1
      %p71 = por %p69, %p70
      %p72 = scmp.ne.s32.totalorder %s61, %s62
      %p73 = scmp.eq.s32.totalorder %s27, 0
      %p74 = por %p72, %p73
      %p75 = scmp.ne.s32.totalorder %s61, %s62
      %p76 = scmp.eq.s32.totalorder %s28, 1
      %p77 = por %p75, %p76
      %p79 = scmp.ne.s32.totalorder %s62, %s78
      %p80 = scmp.eq.s32.totalorder %s28, 0
      %p81 = por %p79, %p80
      %s83 = sadd.s32 %s82, 1
      %p86 = scmp.eq.s32.totalorder %s22, 1
      %p87 = scmp.ne.s32.totalorder %s82, %s84
      %p88 = scmp.eq.s32.totalorder %s22, 0
      %p89 = por %p87, %p88
      %p90 = scmp.ne.s32.totalorder %s82, %s84
      %p91 = scmp.eq.s32.totalorder %s27, 1
      %p92 = por %p90, %p91
      %p93 = scmp.ne.s32.totalorder %s84, %s85
      %p94 = scmp.eq.s32.totalorder %s27, 0
      %p95 = por %p93, %p94
      %p96 = scmp.ne.s32.totalorder %s84, %s85
      %p97 = scmp.eq.s32.totalorder %s28, 1
      %p98 = por %p96, %p97
      %p100 = scmp.ne.s32.totalorder %s85, %s99
      %p101 = scmp.eq.s32.totalorder %s28, 0
      %p102 = por %p100, %p101
      %s104 = sadd.s32 %s103, 1
      %p107 = scmp.eq.s32.totalorder %s22, 1
      %p108 = scmp.ne.s32.totalorder %s103, %s105
      %p109 = scmp.eq.s32.totalorder %s22, 0
      %p110 = por %p108, %p109
      %p111 = scmp.ne.s32.totalorder %s103, %s105
      %p112 = scmp.eq.s32.totalorder %s27, 1
      %p113 = por %p111, %p112
      %p114 = scmp.ne.s32.totalorder %s105, %s106
      %p115 = scmp.eq.s32.totalorder %s27, 0
      %p116 = por %p114, %p115
      %p117 = scmp.ne.s32.totalorder %s105, %s106
      %p118 = scmp.eq.s32.totalorder %s28, 1
      %p119 = por %p117, %p118
      %p121 = scmp.ne.s32.totalorder %s106, %s120
      %p122 = scmp.eq.s32.totalorder %s28, 0
      %p123 = por %p121, %p122
      %s125 = sadd.s32 %s124, 1
      %p128 = scmp.eq.s32.totalorder %s22, 1
      %p129 = scmp.ne.s32.totalorder %s124, %s126
      %p130 = scmp.eq.s32.totalorder %s22, 0
      %p131 = por %p129, %p130
      %p132 = scmp.ne.s32.totalorder %s124, %s126
      %p133 = scmp.eq.s32.totalorder %s27, 1
      %p134 = por %p132, %p133
      %p135 = scmp.ne.s32.totalorder %s126, %s127
      %p136 = scmp.eq.s32.totalorder %s27, 0
      %p137 = por %p135, %p136
      %p138 = scmp.ne.s32.totalorder %s126, %s127
      %p139 = scmp.eq.s32.totalorder %s28, 1
      %p140 = por %p138, %p139
      %p142 = scmp.ne.s32.totalorder %s127, %s141
      %p143 = scmp.eq.s32.totalorder %s28, 0
      %p144 = por %p142, %p143
      %s146 = sadd.s32 %s145, 1
      %p149 = scmp.eq.s32.totalorder %s22, 1
      %p150 = scmp.ne.s32.totalorder %s145, %s147
      %p151 = scmp.eq.s32.totalorder %s22, 0
      %p152 = por %p150, %p151
      %p153 = scmp.ne.s32.totalorder %s145, %s147
      %p154 = scmp.eq.s32.totalorder %s27, 1
      %p155 = por %p153, %p154
      %p156 = scmp.ne.s32.totalorder %s147, %s148
      %p157 = scmp.eq.s32.totalorder %s27, 0
      %p158 = por %p156, %p157
      %p159 = scmp.ne.s32.totalorder %s147, %s148
      %p160 = scmp.eq.s32.totalorder %s28, 1
      %p161 = por %p159, %p160
      %p163 = scmp.ne.s32.totalorder %s148, %s162
      %p164 = scmp.eq.s32.totalorder %s28, 0
      %p165 = por %p163, %p164
      %s167 = sadd.s32 %s166, 1
      %p170 = scmp.eq.s32.totalorder %s22, 1
      %p171 = scmp.ne.s32.totalorder %s166, %s168
      %p172 = scmp.eq.s32.totalorder %s22, 0
      %p173 = por %p171, %p172
      %p174 = scmp.ne.s32.totalorder %s166, %s168
      %p175 = scmp.eq.s32.totalorder %s27, 1
      %p176 = por %p174, %p175
      %p177 = scmp.ne.s32.totalorder %s168, %s169
      %p178 = scmp.eq.s32.totalorder %s27, 0
      %p179 = por %p177, %p178
      %p180 = scmp.ne.s32.totalorder %s168, %s169
      %p181 = scmp.eq.s32.totalorder %s28, 1
      %p182 = por %p180, %p181
      %p184 = scmp.ne.s32.totalorder %s169, %s183
      %p185 = scmp.eq.s32.totalorder %s28, 0
      %p186 = por %p184, %p185
      %s187 = ssub.s32 %s22, %s29
      %p188 = scmp.eq.s32.totalorder %s187, 0
      %s190 = sadd.s32 %s189, 1
      %s191 = scalar_select %p188, %s189, %s190
      %p194 = pneg %p188
      %p195 = scmp.eq.s32.totalorder %s22, 1
      %p196 = por %p194, %p195
      %p197 = scmp.ne.s32.totalorder %s189, %s192
      %p198 = scmp.eq.s32.totalorder %s22, 0
      %p199 = por %p197, %p198
      %p200 = scmp.ne.s32.totalorder %s189, %s192
      %p201 = scmp.eq.s32.totalorder %s27, 1
      %p202 = por %p200, %p201
      %p203 = scmp.ne.s32.totalorder %s192, %s193
      %p204 = scmp.eq.s32.totalorder %s27, 0
      %p205 = por %p203, %p204
      %p206 = scmp.ne.s32.totalorder %s192, %s193
      %p207 = scmp.eq.s32.totalorder %s28, 1
      %p208 = por %p206, %p207
      %p210 = scmp.ne.s32.totalorder %s193, %s209
      %p211 = scmp.eq.s32.totalorder %s28, 0
      %p212 = por %p210, %p211
      %s213 = ssub.s32 %s22, %s29
      %p214 = scmp.eq.s32.totalorder %s213, 0
      %s216 = sadd.s32 %s215, 1
      %s217 = scalar_select %p214, %s215, %s216
      %p220 = pneg %p214
      %p221 = scmp.eq.s32.totalorder %s22, 1
      %p222 = por %p220, %p221
      %p223 = scmp.ne.s32.totalorder %s215, %s218
      %p224 = scmp.eq.s32.totalorder %s22, 0
      %p225 = por %p223, %p224
      %p226 = scmp.ne.s32.totalorder %s215, %s218
      %p227 = scmp.eq.s32.totalorder %s27, 1
      %p228 = por %p226, %p227
      %p229 = scmp.ne.s32.totalorder %s218, %s219
      %p230 = scmp.eq.s32.totalorder %s27, 0
      %p231 = por %p229, %p230
      %p232 = scmp.ne.s32.totalorder %s218, %s219
      %p233 = scmp.eq.s32.totalorder %s28, 1
      %p234 = por %p232, %p233
      %p236 = scmp.ne.s32.totalorder %s219, %s235
      %p237 = scmp.eq.s32.totalorder %s28, 0
      %p238 = por %p236, %p237
      %p239 = scmp.le.s32.totalorder 1, %s22
      %p240 = scmp.lt.s32.totalorder %s22, 3
      %p241 = pnand %p239, %p240
      %p242 = pneg %p241
      // Predicated region
      $region9: #{tpu_custom_call.1} parent=5 // pred_check
        _
      $region10: #{tpu_custom_call.1} parent=5 // pred_check_branch
        %244 = sbr.rel (%p241) target = $region12
      $region11: #{tpu_custom_call.1} parent=5 // pred_region
        %s245 = ssub.s32 %s22, 1
        // Predicated region
        $region13: #{tpu_custom_call.1} parent=11 // pred_check
          %p246 = pneg %p95
        $region14: #{tpu_custom_call.1} parent=11 // pred_check_branch
          %248 = sbr.rel (%p246) target = $region16
        $region15: #{tpu_custom_call.1} parent=11 // pred_region
          _
        $region16: #{tpu_custom_call.1} parent=11 // pred_fallthru
          _
        // Predicated region
        $region17: #{tpu_custom_call.1} parent=11 // pred_check
          %p249 = pneg %p116
        $region18: #{tpu_custom_call.1} parent=11 // pred_check_branch
          %251 = sbr.rel (%p249) target = $region20
        $region19: #{tpu_custom_call.1} parent=11 // pred_region
          %s253 = ssub.s32 1024, 1024
          %254 = vsyncadd [#allocation3], %s253
          %s255 = sshll.u32 [#allocation2], 4
          %s256 = int_to_ptr.vmem [resolvable:$true] %s255
          %261 = dma.hbm_to_vmem [thread:$0]  %s3, 1024, %s256, [#allocation3], 256, 256, 16
        $region20: #{tpu_custom_call.1} parent=11 // pred_fallthru
          _
        // Predicated region
        $region21: #{tpu_custom_call.1} parent=11 // pred_check
          %p262 = pneg %p137
        $region22: #{tpu_custom_call.1} parent=11 // pred_check_branch
          %264 = sbr.rel (%p262) target = $region24
        $region23: #{tpu_custom_call.1} parent=11 // pred_region
          _
        $region24: #{tpu_custom_call.1} parent=11 // pred_fallthru
          _
        // Predicated region
        $region25: #{tpu_custom_call.1} parent=11 // pred_check
          %p265 = pneg %p158
        $region26: #{tpu_custom_call.1} parent=11 // pred_check_branch
          %267 = sbr.rel (%p265) target = $region28
        $region27: #{tpu_custom_call.1} parent=11 // pred_region
          _
        $region28: #{tpu_custom_call.1} parent=11 // pred_fallthru
          _
        // Predicated region
        $region29: #{tpu_custom_call.1} parent=11 // pred_check
          %p268 = pneg %p179
        $region30: #{tpu_custom_call.1} parent=11 // pred_check_branch
          %270 = sbr.rel (%p268) target = $region32
        $region31: #{tpu_custom_call.1} parent=11 // pred_region
          _
        $region32: #{tpu_custom_call.1} parent=11 // pred_fallthru
          _
      $region12: #{tpu_custom_call.1} parent=5 // pred_fallthru
        _
      %p271 = scmp.lt.s32.totalorder %s22, 2
      // Predicated region
      $region33: #{tpu_custom_call.1} parent=5 // pred_check
        %p272 = pneg %p271
      $region34: #{tpu_custom_call.1} parent=5 // pred_check_branch
        %274 = sbr.rel (%p272) target = $region36
      $region35: #{tpu_custom_call.1} parent=5 // pred_region
        // Predicated region
        $region37: #{tpu_custom_call.1} parent=35 // pred_check
          %p275 = pneg %p42
        $region38: #{tpu_custom_call.1} parent=35 // pred_check_branch
          %277 = sbr.rel (%p275) target = $region40
        $region39: #{tpu_custom_call.1} parent=35 // pred_region
          %s278 = smul.u32 16, %s22
          %p279 = scmp.lt.s32.totalorder %s278, 31
          %s280 = scalar_select %p279, %s278, 31
          %s281 = smul.addr %s280, 8
          %s282 = scalar_lea.vmem %s0, %s281
          %s283 = smul.u32 16, %s22
        $region40: #{tpu_custom_call.1} parent=35 // pred_fallthru
          _
        // Predicated region
        $region41: #{tpu_custom_call.1} parent=35 // pred_check
          %p284 = pneg %p68
        $region42: #{tpu_custom_call.1} parent=35 // pred_check_branch
          %286 = sbr.rel (%p284) target = $region44
        $region43: #{tpu_custom_call.1} parent=35 // pred_region
          %s287 = smul.u32 16, %s22
          %p288 = scmp.lt.s32.totalorder %s287, 31
          %s289 = scalar_select %p288, %s287, 31
          %s290 = smul.addr %s289, 8
          %s291 = scalar_lea.vmem %s1, %s290
          %s292 = smul.u32 16, %s22
        $region44: #{tpu_custom_call.1} parent=35 // pred_fallthru
          _
      $region36: #{tpu_custom_call.1} parent=5 // pred_fallthru
        _
      %p293 = scmp.le.s32.totalorder 1, %s22
      %p294 = scmp.lt.s32.totalorder %s22, 3
      %p295 = pnand %p293, %p294
      %p296 = pneg %p295
      // Predicated region
      $region45: #{tpu_custom_call.1} parent=5 // pred_check
        _
      $region46: #{tpu_custom_call.1} parent=5 // pred_check_branch
        %298 = sbr.rel (%p295) target = $region48
      $region47: #{tpu_custom_call.1} parent=5 // pred_region
        %s299 = ssub.s32 %s22, 1
        // Predicated region
        $region49: #{tpu_custom_call.1} parent=47 // pred_check
          %p300 = pneg %p116
        $region50: #{tpu_custom_call.1} parent=47 // pred_check_branch
          %302 = sbr.rel (%p300) target = $region52
        $region51: #{tpu_custom_call.1} parent=47 // pred_region
          %303 = dma.done [#allocation3], 1024
        $region52: #{tpu_custom_call.1} parent=47 // pred_fallthru
          _
        %s304 = smul.u32 16, %s27
        %p305 = scmp.lt.s32.totalorder %s304, 31
        %s306 = scalar_select %p305, %s304, 31
        %s307 = smul.addr %s306, 8
        %s308 = scalar_lea.vmem %s0, %s307
        %p309 = pneg %p48
        %p310 = pneg %p45
        %s311 = smul.u32 16, %s27
        %p312 = scmp.lt.s32.totalorder %s311, 31
        %s313 = scalar_select %p312, %s311, 31
        %s314 = smul.addr %s313, 8
        %s315 = scalar_lea.vmem %s1, %s314
        %p316 = pneg %p74
        %p317 = pneg %p71
        %p318 = pneg %p95
        %p319 = pneg %p92
        %p320 = pneg %p116
        %p321 = pneg %p113
        %p322 = pneg %p137
        %p323 = pneg %p134
        %p324 = pneg %p158
        %p325 = pneg %p155
        %p326 = pneg %p179
        %p327 = pneg %p176
        %p328 = pneg %p205
        %p329 = pneg %p202
        %s330 = sand.u32 %s192, 1
        %s331 = scalar_lea.sflag [#allocation4], %s330
        %s332 = sand.u32 %s192, 1
        %s333 = smul.addr %s332, 128
        %s334 = scalar_lea.vmem [#allocation5], %s333
        %p335 = pneg %p231
        %p336 = pneg %p228
        %s337 = sand.u32 %s218, 1
        %s338 = scalar_lea.sflag [#allocation7], %s337
        %s339 = sand.u32 %s218, 1
        %s340 = smul.addr %s339, 128
        %s341 = scalar_lea.vmem [#allocation6], %s340
        %s342 = smul.u32 16, %s27
        %p343 = scmp.lt.s32.totalorder %s342, 31
        %s344 = scalar_select %p343, %s342, 31
        %s345 = smul.addr %s344, 8
        %s346 = scalar_lea.vmem %s0, %s345
        %s347 = smul.u32 16, %s27
        %s348 = smul.u32 16, %s27
        %p349 = scmp.lt.s32.totalorder %s348, 31
        %s350 = scalar_select %p349, %s348, 31
        %s351 = smul.addr %s350, 8
        %s352 = scalar_lea.vmem %s1, %s351
        %s353 = smul.u32 16, %s27
        %s354 = smul.u32 16, %s27
        %s355 = smul.u32 16, %s27
        %v356 = vld [vmem:[%s346] sm:$0xff]
        %v357 = vld [vmem:[%s346 + $0x8] sm:$0xff]
        %v358 = vld [vmem:[%s346 + $0x10] sm:$0xff]
        %v359 = vld [vmem:[%s346 + $0x18] sm:$0xff]
        %v360 = vld [vmem:[%s346 + $0x20] sm:$0xff]
        %v361 = vld [vmem:[%s346 + $0x28] sm:$0xff]
        %v362 = vld [vmem:[%s346 + $0x30] sm:$0xff]
        %v363 = vld [vmem:[%s346 + $0x38] sm:$0xff]
        %v364 = vld [vmem:[%s346 + $0x40] sm:$0xff]
        %v365 = vld [vmem:[%s346 + $0x48] sm:$0xff]
        %v366 = vld [vmem:[%s346 + $0x50] sm:$0xff]
        %v367 = vld [vmem:[%s346 + $0x58] sm:$0xff]
        %v368 = vld [vmem:[%s346 + $0x60] sm:$0xff]
        %v369 = vld [vmem:[%s346 + $0x68] sm:$0xff]
        %v370 = vld [vmem:[%s346 + $0x70] sm:$0xff]
        %v371 = vld [vmem:[%s346 + $0x78] sm:$0xff]
        %v372 = vld [vmem:[%s2] sm:$0xff]
        %v373 = vld [vmem:[%s2 + $0x8] sm:$0xff]
        %v374 = vld [vmem:[%s2 + $0x10] sm:$0xff]
        %v375 = vld [vmem:[%s2 + $0x18] sm:$0xff]
        %v376 = vld [vmem:[%s2 + $0x20] sm:$0xff]
        %v377 = vld [vmem:[%s2 + $0x28] sm:$0xff]
        %v378 = vld [vmem:[%s2 + $0x30] sm:$0xff]
        %v379 = vld [vmem:[%s2 + $0x38] sm:$0xff]
        %v380 = vld [vmem:[%s2 + $0x40] sm:$0xff]
        %v381 = vld [vmem:[%s2 + $0x48] sm:$0xff]
        %v382 = vld [vmem:[%s2 + $0x50] sm:$0xff]
        %v383 = vld [vmem:[%s2 + $0x58] sm:$0xff]
        %v384 = vld [vmem:[%s2 + $0x60] sm:$0xff]
        %v385 = vld [vmem:[%s2 + $0x68] sm:$0xff]
        %v386 = vld [vmem:[%s2 + $0x70] sm:$0xff]
        %v387 = vld [vmem:[%s2 + $0x78] sm:$0xff]
        %388 = vmatprep.subr.mxu0 0.0
        %389 = vmatpush1.msra.mxu0 %v387
        %390 = vmatprep.subr.mxu0 0.0
        %391 = vmatpush1.msra.mxu0 %v386
        %392 = vmatprep.subr.mxu0 0.0
        %393 = vmatpush1.msra.mxu0 %v385
        %394 = vmatprep.subr.mxu0 0.0
        %395 = vmatpush1.msra.mxu0 %v384
        %396 = vmatprep.subr.mxu0 0.0
        %397 = vmatpush1.msra.mxu0 %v383
        %398 = vmatprep.subr.mxu0 0.0
        %399 = vmatpush1.msra.mxu0 %v382
        %400 = vmatprep.subr.mxu0 0.0
        %401 = vmatpush1.msra.mxu0 %v381
        %402 = vmatprep.subr.mxu0 0.0
        %403 = vmatpush1.msra.mxu0 %v380
        %404 = vmatprep.subr.mxu0 0.0
        %405 = vmatpush1.msra.mxu0 %v379
        %406 = vmatprep.subr.mxu0 0.0
        %407 = vmatpush1.msra.mxu0 %v378
        %408 = vmatprep.subr.mxu0 0.0
        %409 = vmatpush1.msra.mxu0 %v377
        %410 = vmatprep.subr.mxu0 0.0
        %411 = vmatpush1.msra.mxu0 %v376
        %412 = vmatprep.subr.mxu0 0.0
        %413 = vmatpush1.msra.mxu0 %v375
        %414 = vmatprep.subr.mxu0 0.0
        %415 = vmatpush1.msra.mxu0 %v374
        %416 = vmatprep.subr.mxu0 0.0
        %417 = vmatpush1.msra.mxu0 %v373
        %418 = vmatprep.subr.mxu0 0.0
        %419 = vmatpush1.msra.mxu0 %v372
        %420 = vmatprep.subr.mxu0 0.0
        %421 = vmatpush2.msra.mxu0 0.0
        %422 = vmatprep.subr.mxu0 0.0
        %423 = vmatpush2.msra.mxu0 0.0
        %424 = vmatprep.subr.mxu0 0.0
        %425 = vmatpush2.msra.mxu0 0.0
        %426 = vmatprep.subr.mxu0 0.0
        %427 = vmatpush2.msra.mxu0 0.0
        %428 = vmatprep.subr.mxu0 0.0
        %429 = vmatpush2.msra.mxu0 0.0
        %430 = vmatprep.subr.mxu0 0.0
        %431 = vmatpush2.msra.mxu0 0.0
        %432 = vmatprep.subr.mxu0 0.0
        %433 = vmatpush2.msra.mxu0 0.0
        %434 = vmatprep.subr.mxu0 0.0
        %435 = vmatpush2.msra.mxu0 0.0
        %436 = vmatprep.subr.mxu0 0.0
        %437 = vmatpush2.msra.mxu0 0.0
        %438 = vmatprep.subr.mxu0 0.0
        %439 = vmatpush2.msra.mxu0 0.0
        %440 = vmatprep.subr.mxu0 0.0
        %441 = vmatpush2.msra.mxu0 0.0
        %442 = vmatprep.subr.mxu0 0.0
        %443 = vmatpush2.msra.mxu0 0.0
        %444 = vmatprep.subr.mxu0 0.0
        %445 = vmatpush2.msra.mxu0 0.0
        %446 = vmatprep.subr.mxu0 0.0
        %447 = vmatpush2.msra.mxu0 0.0
        %448 = vmatprep.subr.mxu0 0.0
        %449 = vmatpush2.msra.mxu0 0.0
        %450 = vmatprep.subr.mxu0 0.0
        %451 = vmatpush2.msra.mxu0 0.0
        %452 = vmatprep.mubr.f32.mxu0 0.0
        %453 = vmatmul.mubr.f32.gmra.mxu0 %v356
        %v454 = vpop.f32.mrf.mxu0
        %v455 = vadd.f32 0.0, %v454
        %v456 = vpop.f32.mrf.mxu0
        %457 = vmatprep.mubr.f32.mxu0 0.0
        %458 = vmatmul.mubr.f32.gmra.mxu0 %v357
        %v459 = vpop.f32.mrf.mxu0
        %v460 = vadd.f32 0.0, %v459
        %v461 = vpop.f32.mrf.mxu0
        %462 = vmatprep.mubr.f32.mxu0 0.0
        %463 = vmatmul.mubr.f32.gmra.mxu0 %v358
        %v464 = vpop.f32.mrf.mxu0
        %v465 = vadd.f32 0.0, %v464
        %v466 = vpop.f32.mrf.mxu0
        %467 = vmatprep.mubr.f32.mxu0 0.0
        %468 = vmatmul.mubr.f32.gmra.mxu0 %v359
        %v469 = vpop.f32.mrf.mxu0
        %v470 = vadd.f32 0.0, %v469
        %v471 = vpop.f32.mrf.mxu0
        %472 = vmatprep.mubr.f32.mxu0 0.0
        %473 = vmatmul.mubr.f32.gmra.mxu0 %v360
        %v474 = vpop.f32.mrf.mxu0
        %v475 = vadd.f32 0.0, %v474
        %v476 = vpop.f32.mrf.mxu0
        %477 = vmatprep.mubr.f32.mxu0 0.0
        %478 = vmatmul.mubr.f32.gmra.mxu0 %v361
        %v479 = vpop.f32.mrf.mxu0
        %v480 = vadd.f32 0.0, %v479
        %v481 = vpop.f32.mrf.mxu0
        %482 = vmatprep.mubr.f32.mxu0 0.0
        %483 = vmatmul.mubr.f32.gmra.mxu0 %v362
        %v484 = vpop.f32.mrf.mxu0
        %v485 = vadd.f32 0.0, %v484
        %v486 = vpop.f32.mrf.mxu0
        %487 = vmatprep.mubr.f32.mxu0 0.0
        %488 = vmatmul.mubr.f32.gmra.mxu0 %v363
        %v489 = vpop.f32.mrf.mxu0
        %v490 = vadd.f32 0.0, %v489
        %v491 = vpop.f32.mrf.mxu0
        %492 = vmatprep.mubr.f32.mxu0 0.0
        %493 = vmatmul.mubr.f32.gmra.mxu0 %v364
        %v494 = vpop.f32.mrf.mxu0
        %v495 = vadd.f32 0.0, %v494
        %v496 = vpop.f32.mrf.mxu0
        %497 = vmatprep.mubr.f32.mxu0 0.0
        %498 = vmatmul.mubr.f32.gmra.mxu0 %v365
        %v499 = vpop.f32.mrf.mxu0
        %v500 = vadd.f32 0.0, %v499
        %v501 = vpop.f32.mrf.mxu0
        %502 = vmatprep.mubr.f32.mxu0 0.0
        %503 = vmatmul.mubr.f32.gmra.mxu0 %v366
        %v504 = vpop.f32.mrf.mxu0
        %v505 = vadd.f32 0.0, %v504
        %v506 = vpop.f32.mrf.mxu0
        %507 = vmatprep.mubr.f32.mxu0 0.0
        %508 = vmatmul.mubr.f32.gmra.mxu0 %v367
        %v509 = vpop.f32.mrf.mxu0
        %v510 = vadd.f32 0.0, %v509
        %v511 = vpop.f32.mrf.mxu0
        %512 = vmatprep.mubr.f32.mxu0 0.0
        %513 = vmatmul.mubr.f32.gmra.mxu0 %v368
        %v514 = vpop.f32.mrf.mxu0
        %v515 = vadd.f32 0.0, %v514
        %v516 = vpop.f32.mrf.mxu0
        %517 = vmatprep.mubr.f32.mxu0 0.0
        %518 = vmatmul.mubr.f32.gmra.mxu0 %v369
        %v519 = vpop.f32.mrf.mxu0
        %v520 = vadd.f32 0.0, %v519
        %v521 = vpop.f32.mrf.mxu0
        %522 = vmatprep.mubr.f32.mxu0 0.0
        %523 = vmatmul.mubr.f32.gmra.mxu0 %v370
        %v524 = vpop.f32.mrf.mxu0
        %v525 = vadd.f32 0.0, %v524
        %v526 = vpop.f32.mrf.mxu0
        %527 = vmatprep.mubr.f32.mxu0 0.0
        %528 = vmatmul.mubr.f32.gmra.mxu0 %v371
        %v529 = vpop.f32.mrf.mxu0
        %v530 = vadd.f32 0.0, %v529
        %v531 = vpop.f32.mrf.mxu0
        %532 = vdwg.mxu0
        %v533 = vmax.f32 %v455, 0.0
        %v534 = vmax.f32 %v460, 0.0
        %v535 = vmax.f32 %v465, 0.0
        %v536 = vmax.f32 %v470, 0.0
        %v537 = vmax.f32 %v475, 0.0
        %v538 = vmax.f32 %v480, 0.0
        %v539 = vmax.f32 %v485, 0.0
        %v540 = vmax.f32 %v490, 0.0
        %v541 = vmax.f32 %v495, 0.0
        %v542 = vmax.f32 %v500, 0.0
        %v543 = vmax.f32 %v505, 0.0
        %v544 = vmax.f32 %v510, 0.0
        %v545 = vmax.f32 %v515, 0.0
        %v546 = vmax.f32 %v520, 0.0
        %v547 = vmax.f32 %v525, 0.0
        %v548 = vmax.f32 %v530, 0.0
        %v549 = vld [vmem:[#allocation2] sm:$0xff]
        %v550 = vld [vmem:[#allocation2 + $0x8] sm:$0xff]
        %v551 = vld [vmem:[#allocation2 + $0x10] sm:$0xff]
        %v552 = vld [vmem:[#allocation2 + $0x18] sm:$0xff]
        %v553 = vld [vmem:[#allocation2 + $0x20] sm:$0xff]
        %v554 = vld [vmem:[#allocation2 + $0x28] sm:$0xff]
        %v555 = vld [vmem:[#allocation2 + $0x30] sm:$0xff]
        %v556 = vld [vmem:[#allocation2 + $0x38] sm:$0xff]
        %vm557 = vcmask 261120
        %v559 = vsel %vm557, %v533, 0
        %v562 = vsel %vm557, %v534, 0
        %v565 = vsel %vm557, %v535, 0
        %v568 = vsel %vm557, %v536, 0
        %v571 = vsel %vm557, %v537, 0
        %v574 = vsel %vm557, %v538, 0
        %v577 = vsel %vm557, %v539, 0
        %v580 = vsel %vm557, %v540, 0
        %v583 = vsel %vm557, %v541, 0
        %v586 = vsel %vm557, %v542, 0
        %v589 = vsel %vm557, %v543, 0
        %v592 = vsel %vm557, %v544, 0
        %v595 = vsel %vm557, %v545, 0
        %v598 = vsel %vm557, %v546, 0
        %v601 = vsel %vm557, %v547, 0
        %v604 = vsel %vm557, %v548, 0
        %606 = vmatprep.subr.mxu0 0.0
        %607 = vmatpush1.msra.mxu0 0.0
        %608 = vmatprep.subr.mxu0 0.0
        %609 = vmatpush1.msra.mxu0 0.0
        %610 = vmatprep.subr.mxu0 0.0
        %611 = vmatpush1.msra.mxu0 0.0
        %612 = vmatprep.subr.mxu0 0.0
        %613 = vmatpush1.msra.mxu0 0.0
        %614 = vmatprep.subr.mxu0 0.0
        %615 = vmatpush1.msra.mxu0 0.0
        %616 = vmatprep.subr.mxu0 0.0
        %617 = vmatpush1.msra.mxu0 0.0
        %618 = vmatprep.subr.mxu0 0.0
        %619 = vmatpush1.msra.mxu0 0.0
        %620 = vmatprep.subr.mxu0 0.0
        %621 = vmatpush1.msra.mxu0 0.0
        %622 = vmatprep.subr.mxu0 0.0
        %623 = vmatpush1.msra.mxu0 0.0
        %624 = vmatprep.subr.mxu0 0.0
        %625 = vmatpush1.msra.mxu0 0.0
        %626 = vmatprep.subr.mxu0 0.0
        %627 = vmatpush1.msra.mxu0 0.0
        %628 = vmatprep.subr.mxu0 0.0
        %629 = vmatpush1.msra.mxu0 0.0
        %630 = vmatprep.subr.mxu0 %v556
        %631 = vmatpush1.msra.mxu0 %v555
        %632 = vmatprep.subr.mxu0 %v554
        %633 = vmatpush1.msra.mxu0 %v553
        %634 = vmatprep.subr.mxu0 %v552
        %635 = vmatpush1.msra.mxu0 %v551
        %636 = vmatprep.subr.mxu0 %v550
        %637 = vmatpush1.msra.mxu0 %v549
        %638 = vmatprep.subr.mxu0 0.0
        %639 = vmatpush2.msra.mxu0 0.0
        %640 = vmatprep.subr.mxu0 0.0
        %641 = vmatpush2.msra.mxu0 0.0
        %642 = vmatprep.subr.mxu0 0.0
        %643 = vmatpush2.msra.mxu0 0.0
        %644 = vmatprep.subr.mxu0 0.0
        %645 = vmatpush2.msra.mxu0 0.0
        %646 = vmatprep.subr.mxu0 0.0
        %647 = vmatpush2.msra.mxu0 0.0
        %648 = vmatprep.subr.mxu0 0.0
        %649 = vmatpush2.msra.mxu0 0.0
        %650 = vmatprep.subr.mxu0 0.0
        %651 = vmatpush2.msra.mxu0 0.0
        %652 = vmatprep.subr.mxu0 0.0
        %653 = vmatpush2.msra.mxu0 0.0
        %654 = vmatprep.subr.mxu0 0.0
        %655 = vmatpush2.msra.mxu0 0.0
        %656 = vmatprep.subr.mxu0 0.0
        %657 = vmatpush2.msra.mxu0 0.0
        %658 = vmatprep.subr.mxu0 0.0
        %659 = vmatpush2.msra.mxu0 0.0
        %660 = vmatprep.subr.mxu0 0.0
        %661 = vmatpush2.msra.mxu0 0.0
        %662 = vmatprep.subr.mxu0 0.0
        %663 = vmatpush2.msra.mxu0 0.0
        %664 = vmatprep.subr.mxu0 0.0
        %665 = vmatpush2.msra.mxu0 0.0
        %666 = vmatprep.subr.mxu0 0.0
        %667 = vmatpush2.msra.mxu0 0.0
        %668 = vmatprep.subr.mxu0 0.0
        %669 = vmatpush2.msra.mxu0 0.0
        %670 = vmatprep.mubr.f32.mxu0 0.0
        %671 = vmatmul.mubr.f32.gmra.mxu0 %v559
        %v672 = vpop.f32.mrf.mxu0
        %v673 = vadd.f32 0.0, %v672
        %v674 = vpop.f32.mrf.mxu0
        %v675 = vadd.f32 0.0, %v674
        %676 = vmatprep.mubr.f32.mxu0 0.0
        %677 = vmatmul.mubr.f32.gmra.mxu0 %v562
        %v678 = vpop.f32.mrf.mxu0
        %v679 = vadd.f32 0.0, %v678
        %v680 = vpop.f32.mrf.mxu0
        %v681 = vadd.f32 0.0, %v680
        %682 = vmatprep.mubr.f32.mxu0 0.0
        %683 = vmatmul.mubr.f32.gmra.mxu0 %v565
        %v684 = vpop.f32.mrf.mxu0
        %v685 = vadd.f32 0.0, %v684
        %v686 = vpop.f32.mrf.mxu0
        %v687 = vadd.f32 0.0, %v686
        %688 = vmatprep.mubr.f32.mxu0 0.0
        %689 = vmatmul.mubr.f32.gmra.mxu0 %v568
        %v690 = vpop.f32.mrf.mxu0
        %v691 = vadd.f32 0.0, %v690
        %v692 = vpop.f32.mrf.mxu0
        %v693 = vadd.f32 0.0, %v692
        %694 = vmatprep.mubr.f32.mxu0 0.0
        %695 = vmatmul.mubr.f32.gmra.mxu0 %v571
        %v696 = vpop.f32.mrf.mxu0
        %v697 = vadd.f32 0.0, %v696
        %v698 = vpop.f32.mrf.mxu0
        %v699 = vadd.f32 0.0, %v698
        %700 = vmatprep.mubr.f32.mxu0 0.0
        %701 = vmatmul.mubr.f32.gmra.mxu0 %v574
        %v702 = vpop.f32.mrf.mxu0
        %v703 = vadd.f32 0.0, %v702
        %v704 = vpop.f32.mrf.mxu0
        %v705 = vadd.f32 0.0, %v704
        %706 = vmatprep.mubr.f32.mxu0 0.0
        %707 = vmatmul.mubr.f32.gmra.mxu0 %v577
        %v708 = vpop.f32.mrf.mxu0
        %v709 = vadd.f32 0.0, %v708
        %v710 = vpop.f32.mrf.mxu0
        %v711 = vadd.f32 0.0, %v710
        %712 = vmatprep.mubr.f32.mxu0 0.0
        %713 = vmatmul.mubr.f32.gmra.mxu0 %v580
        %v714 = vpop.f32.mrf.mxu0
        %v715 = vadd.f32 0.0, %v714
        %v716 = vpop.f32.mrf.mxu0
        %v717 = vadd.f32 0.0, %v716
        %718 = vmatprep.mubr.f32.mxu0 0.0
        %719 = vmatmul.mubr.f32.gmra.mxu0 %v583
        %v720 = vpop.f32.mrf.mxu0
        %v721 = vadd.f32 0.0, %v720
        %v722 = vpop.f32.mrf.mxu0
        %v723 = vadd.f32 0.0, %v722
        %724 = vmatprep.mubr.f32.mxu0 0.0
        %725 = vmatmul.mubr.f32.gmra.mxu0 %v586
        %v726 = vpop.f32.mrf.mxu0
        %v727 = vadd.f32 0.0, %v726
        %v728 = vpop.f32.mrf.mxu0
        %v729 = vadd.f32 0.0, %v728
        %730 = vmatprep.mubr.f32.mxu0 0.0
        %731 = vmatmul.mubr.f32.gmra.mxu0 %v589
        %v732 = vpop.f32.mrf.mxu0
        %v733 = vadd.f32 0.0, %v732
        %v734 = vpop.f32.mrf.mxu0
        %v735 = vadd.f32 0.0, %v734
        %736 = vmatprep.mubr.f32.mxu0 0.0
        %737 = vmatmul.mubr.f32.gmra.mxu0 %v592
        %v738 = vpop.f32.mrf.mxu0
        %v739 = vadd.f32 0.0, %v738
        %v740 = vpop.f32.mrf.mxu0
        %v741 = vadd.f32 0.0, %v740
        %742 = vmatprep.mubr.f32.mxu0 0.0
        %743 = vmatmul.mubr.f32.gmra.mxu0 %v595
        %v744 = vpop.f32.mrf.mxu0
        %v745 = vadd.f32 0.0, %v744
        %v746 = vpop.f32.mrf.mxu0
        %v747 = vadd.f32 0.0, %v746
        %748 = vmatprep.mubr.f32.mxu0 0.0
        %749 = vmatmul.mubr.f32.gmra.mxu0 %v598
        %v750 = vpop.f32.mrf.mxu0
        %v751 = vadd.f32 0.0, %v750
        %v752 = vpop.f32.mrf.mxu0
        %v753 = vadd.f32 0.0, %v752
        %754 = vmatprep.mubr.f32.mxu0 0.0
        %755 = vmatmul.mubr.f32.gmra.mxu0 %v601
        %v756 = vpop.f32.mrf.mxu0
        %v757 = vadd.f32 0.0, %v756
        %v758 = vpop.f32.mrf.mxu0
        %v759 = vadd.f32 0.0, %v758
        %760 = vmatprep.mubr.f32.mxu0 0.0
        %761 = vmatmul.mubr.f32.gmra.mxu0 %v604
        %v762 = vpop.f32.mrf.mxu0
        %v763 = vadd.f32 0.0, %v762
        %v764 = vpop.f32.mrf.mxu0
        %v765 = vadd.f32 0.0, %v764
        %766 = vdwg.mxu0
        %vm767 = vcmp.gt.f32.partialorder %v675, 20.0
        %vm768 = vcmp.gt.f32.partialorder %v681, 20.0
        %vm769 = vcmp.gt.f32.partialorder %v687, 20.0
        %vm770 = vcmp.gt.f32.partialorder %v693, 20.0
        %vm771 = vcmp.gt.f32.partialorder %v699, 20.0
        %vm772 = vcmp.gt.f32.partialorder %v705, 20.0
        %vm773 = vcmp.gt.f32.partialorder %v711, 20.0
        %vm774 = vcmp.gt.f32.partialorder %v717, 20.0
        %vm775 = vcmp.gt.f32.partialorder %v723, 20.0
        %vm776 = vcmp.gt.f32.partialorder %v729, 20.0
        %vm777 = vcmp.gt.f32.partialorder %v735, 20.0
        %vm778 = vcmp.gt.f32.partialorder %v741, 20.0
        %vm779 = vcmp.gt.f32.partialorder %v747, 20.0
        %vm780 = vcmp.gt.f32.partialorder %v753, 20.0
        %vm781 = vcmp.gt.f32.partialorder %v759, 20.0
        %vm782 = vcmp.gt.f32.partialorder %v765, 20.0
        %v783 = vmin.f32 %v675, 20.0
        %v784 = vmin.f32 %v681, 20.0
        %v785 = vmin.f32 %v687, 20.0
        %v786 = vmin.f32 %v693, 20.0
        %v787 = vmin.f32 %v699, 20.0
        %v788 = vmin.f32 %v705, 20.0
        %v789 = vmin.f32 %v711, 20.0
        %v790 = vmin.f32 %v717, 20.0
        %v791 = vmin.f32 %v723, 20.0
        %v792 = vmin.f32 %v729, 20.0
        %v793 = vmin.f32 %v735, 20.0
        %v794 = vmin.f32 %v741, 20.0
        %v795 = vmin.f32 %v747, 20.0
        %v796 = vmin.f32 %v753, 20.0
        %v797 = vmin.f32 %v759, 20.0
        %v798 = vmin.f32 %v765, 20.0
        %v799 = vmul.f32 %v783, 1.442695
        %v800 = vpow.pop %v799
        %v801 = vmul.f32 %v784, 1.442695
        %v802 = vpow.pop %v801
        %v803 = vmul.f32 %v785, 1.442695
        %v804 = vpow.pop %v803
        %v805 = vmul.f32 %v786, 1.442695
        %v806 = vpow.pop %v805
        %v807 = vmul.f32 %v787, 1.442695
        %v808 = vpow.pop %v807
        %v809 = vmul.f32 %v788, 1.442695
        %v810 = vpow.pop %v809
        %v811 = vmul.f32 %v789, 1.442695
        %v812 = vpow.pop %v811
        %v813 = vmul.f32 %v790, 1.442695
        %v814 = vpow.pop %v813
        %v815 = vmul.f32 %v791, 1.442695
        %v816 = vpow.pop %v815
        %v817 = vmul.f32 %v792, 1.442695
        %v818 = vpow.pop %v817
        %v819 = vmul.f32 %v793, 1.442695
        %v820 = vpow.pop %v819
        %v821 = vmul.f32 %v794, 1.442695
        %v822 = vpow.pop %v821
        %v823 = vmul.f32 %v795, 1.442695
        %v824 = vpow.pop %v823
        %v825 = vmul.f32 %v796, 1.442695
        %v826 = vpow.pop %v825
        %v827 = vmul.f32 %v797, 1.442695
        %v828 = vpow.pop %v827
        %v829 = vmul.f32 %v798, 1.442695
        %v830 = vpow.pop %v829
        %v831 = vadd.f32 %v800, 1.0
        %v832 = vlog2.pop %v831
        %v833 = vmul.f32 %v832, 0.6931472
        %v834 = vmul.f32 -0.5, %v800
        %v835 = vadd.f32 %v834, 1.0
        %v836 = vmul.f32 %v835, %v800
        %v837 = vand.u32 2147483647, %v800
        %vm838 = vcmp.lt.f32.partialorder %v837, 0.0004427343
        %v839 = vsel %vm838, %v836, %v833
        %v840 = vadd.f32 %v802, 1.0
        %v841 = vlog2.pop %v840
        %v842 = vmul.f32 %v841, 0.6931472
        %v843 = vmul.f32 -0.5, %v802
        %v844 = vadd.f32 %v843, 1.0
        %v845 = vmul.f32 %v844, %v802
        %v846 = vand.u32 2147483647, %v802
        %vm847 = vcmp.lt.f32.partialorder %v846, 0.0004427343
        %v848 = vsel %vm847, %v845, %v842
        %v849 = vadd.f32 %v804, 1.0
        %v850 = vlog2.pop %v849
        %v851 = vmul.f32 %v850, 0.6931472
        %v852 = vmul.f32 -0.5, %v804
        %v853 = vadd.f32 %v852, 1.0
        %v854 = vmul.f32 %v853, %v804
        %v855 = vand.u32 2147483647, %v804
        %vm856 = vcmp.lt.f32.partialorder %v855, 0.0004427343
        %v857 = vsel %vm856, %v854, %v851
        %v858 = vadd.f32 %v806, 1.0
        %v859 = vlog2.pop %v858
        %v860 = vmul.f32 %v859, 0.6931472
        %v861 = vmul.f32 -0.5, %v806
        %v862 = vadd.f32 %v861, 1.0
        %v863 = vmul.f32 %v862, %v806
        %v864 = vand.u32 2147483647, %v806
        %vm865 = vcmp.lt.f32.partialorder %v864, 0.0004427343
        %v866 = vsel %vm865, %v863, %v860
        %v867 = vadd.f32 %v808, 1.0
        %v868 = vlog2.pop %v867
        %v869 = vmul.f32 %v868, 0.6931472
        %v870 = vmul.f32 -0.5, %v808
        %v871 = vadd.f32 %v870, 1.0
        %v872 = vmul.f32 %v871, %v808
        %v873 = vand.u32 2147483647, %v808
        %vm874 = vcmp.lt.f32.partialorder %v873, 0.0004427343
        %v875 = vsel %vm874, %v872, %v869
        %v876 = vadd.f32 %v810, 1.0
        %v877 = vlog2.pop %v876
        %v878 = vmul.f32 %v877, 0.6931472
        %v879 = vmul.f32 -0.5, %v810
        %v880 = vadd.f32 %v879, 1.0
        %v881 = vmul.f32 %v880, %v810
        %v882 = vand.u32 2147483647, %v810
        %vm883 = vcmp.lt.f32.partialorder %v882, 0.0004427343
        %v884 = vsel %vm883, %v881, %v878
        %v885 = vadd.f32 %v812, 1.0
        %v886 = vlog2.pop %v885
        %v887 = vmul.f32 %v886, 0.6931472
        %v888 = vmul.f32 -0.5, %v812
        %v889 = vadd.f32 %v888, 1.0
        %v890 = vmul.f32 %v889, %v812
        %v891 = vand.u32 2147483647, %v812
        %vm892 = vcmp.lt.f32.partialorder %v891, 0.0004427343
        %v893 = vsel %vm892, %v890, %v887
        %v894 = vadd.f32 %v814, 1.0
        %v895 = vlog2.pop %v894
        %v896 = vmul.f32 %v895, 0.6931472
        %v897 = vmul.f32 -0.5, %v814
        %v898 = vadd.f32 %v897, 1.0
        %v899 = vmul.f32 %v898, %v814
        %v900 = vand.u32 2147483647, %v814
        %vm901 = vcmp.lt.f32.partialorder %v900, 0.0004427343
        %v902 = vsel %vm901, %v899, %v896
        %v903 = vadd.f32 %v816, 1.0
        %v904 = vlog2.pop %v903
        %v905 = vmul.f32 %v904, 0.6931472
        %v906 = vmul.f32 -0.5, %v816
        %v907 = vadd.f32 %v906, 1.0
        %v908 = vmul.f32 %v907, %v816
        %v909 = vand.u32 2147483647, %v816
        %vm910 = vcmp.lt.f32.partialorder %v909, 0.0004427343
        %v911 = vsel %vm910, %v908, %v905
        %v912 = vadd.f32 %v818, 1.0
        %v913 = vlog2.pop %v912
        %v914 = vmul.f32 %v913, 0.6931472
        %v915 = vmul.f32 -0.5, %v818
        %v916 = vadd.f32 %v915, 1.0
        %v917 = vmul.f32 %v916, %v818
        %v918 = vand.u32 2147483647, %v818
        %vm919 = vcmp.lt.f32.partialorder %v918, 0.0004427343
        %v920 = vsel %vm919, %v917, %v914
        %v921 = vadd.f32 %v820, 1.0
        %v922 = vlog2.pop %v921
        %v923 = vmul.f32 %v922, 0.6931472
        %v924 = vmul.f32 -0.5, %v820
        %v925 = vadd.f32 %v924, 1.0
        %v926 = vmul.f32 %v925, %v820
        %v927 = vand.u32 2147483647, %v820
        %vm928 = vcmp.lt.f32.partialorder %v927, 0.0004427343
        %v929 = vsel %vm928, %v926, %v923
        %v930 = vadd.f32 %v822, 1.0
        %v931 = vlog2.pop %v930
        %v932 = vmul.f32 %v931, 0.6931472
        %v933 = vmul.f32 -0.5, %v822
        %v934 = vadd.f32 %v933, 1.0
        %v935 = vmul.f32 %v934, %v822
        %v936 = vand.u32 2147483647, %v822
        %vm937 = vcmp.lt.f32.partialorder %v936, 0.0004427343
        %v938 = vsel %vm937, %v935, %v932
        %v939 = vadd.f32 %v824, 1.0
        %v940 = vlog2.pop %v939
        %v941 = vmul.f32 %v940, 0.6931472
        %v942 = vmul.f32 -0.5, %v824
        %v943 = vadd.f32 %v942, 1.0
        %v944 = vmul.f32 %v943, %v824
        %v945 = vand.u32 2147483647, %v824
        %vm946 = vcmp.lt.f32.partialorder %v945, 0.0004427343
        %v947 = vsel %vm946, %v944, %v941
        %v948 = vadd.f32 %v826, 1.0
        %v949 = vlog2.pop %v948
        %v950 = vmul.f32 %v949, 0.6931472
        %v951 = vmul.f32 -0.5, %v826
        %v952 = vadd.f32 %v951, 1.0
        %v953 = vmul.f32 %v952, %v826
        %v954 = vand.u32 2147483647, %v826
        %vm955 = vcmp.lt.f32.partialorder %v954, 0.0004427343
        %v956 = vsel %vm955, %v953, %v950
        %v957 = vadd.f32 %v828, 1.0
        %v958 = vlog2.pop %v957
        %v959 = vmul.f32 %v958, 0.6931472
        %v960 = vmul.f32 -0.5, %v828
        %v961 = vadd.f32 %v960, 1.0
        %v962 = vmul.f32 %v961, %v828
        %v963 = vand.u32 2147483647, %v828
        %vm964 = vcmp.lt.f32.partialorder %v963, 0.0004427343
        %v965 = vsel %vm964, %v962, %v959
        %v966 = vadd.f32 %v830, 1.0
        %v967 = vlog2.pop %v966
        %v968 = vmul.f32 %v967, 0.6931472
        %v969 = vmul.f32 -0.5, %v830
        %v970 = vadd.f32 %v969, 1.0
        %v971 = vmul.f32 %v970, %v830
        %v972 = vand.u32 2147483647, %v830
        %vm973 = vcmp.lt.f32.partialorder %v972, 0.0004427343
        %v974 = vsel %vm973, %v971, %v968
        %v975 = vsel %vm767, %v675, %v839
        %v976 = vsel %vm768, %v681, %v848
        %v977 = vsel %vm769, %v687, %v857
        %v978 = vsel %vm770, %v693, %v866
        %v979 = vsel %vm771, %v699, %v875
        %v980 = vsel %vm772, %v705, %v884
        %v981 = vsel %vm773, %v711, %v893
        %v982 = vsel %vm774, %v717, %v902
        %v983 = vsel %vm775, %v723, %v911
        %v984 = vsel %vm776, %v729, %v920
        %v985 = vsel %vm777, %v735, %v929
        %v986 = vsel %vm778, %v741, %v938
        %v987 = vsel %vm779, %v747, %v947
        %v988 = vsel %vm780, %v753, %v956
        %v989 = vsel %vm781, %v759, %v965
        %v990 = vsel %vm782, %v765, %v974
        %v991 = vld [vmem:[%s352] sm:$0xff]
        %v992 = vld [vmem:[%s352 + $0x8] sm:$0xff]
        %v993 = vld [vmem:[%s352 + $0x10] sm:$0xff]
        %v994 = vld [vmem:[%s352 + $0x18] sm:$0xff]
        %v995 = vld [vmem:[%s352 + $0x20] sm:$0xff]
        %v996 = vld [vmem:[%s352 + $0x28] sm:$0xff]
        %v997 = vld [vmem:[%s352 + $0x30] sm:$0xff]
        %v998 = vld [vmem:[%s352 + $0x38] sm:$0xff]
        %v999 = vld [vmem:[%s352 + $0x40] sm:$0xff]
        %v1000 = vld [vmem:[%s352 + $0x48] sm:$0xff]
        %v1001 = vld [vmem:[%s352 + $0x50] sm:$0xff]
        %v1002 = vld [vmem:[%s352 + $0x58] sm:$0xff]
        %v1003 = vld [vmem:[%s352 + $0x60] sm:$0xff]
        %v1004 = vld [vmem:[%s352 + $0x68] sm:$0xff]
        %v1005 = vld [vmem:[%s352 + $0x70] sm:$0xff]
        %v1006 = vld [vmem:[%s352 + $0x78] sm:$0xff]
        %v1007 = vld [vmem:[%s4] sm:$0xff]
        %v1008 = vld [vmem:[%s4 + $0x8] sm:$0xff]
        %v1009 = vld [vmem:[%s4 + $0x10] sm:$0xff]
        %v1010 = vld [vmem:[%s4 + $0x18] sm:$0xff]
        %v1012 = vsel %vm557, %v991, 0
        %v1015 = vsel %vm557, %v992, 0
        %v1018 = vsel %vm557, %v993, 0
        %v1021 = vsel %vm557, %v994, 0
        %v1024 = vsel %vm557, %v995, 0
        %v1027 = vsel %vm557, %v996, 0
        %v1030 = vsel %vm557, %v997, 0
        %v1033 = vsel %vm557, %v998, 0
        %v1036 = vsel %vm557, %v999, 0
        %v1039 = vsel %vm557, %v1000, 0
        %v1042 = vsel %vm557, %v1001, 0
        %v1045 = vsel %vm557, %v1002, 0
        %v1048 = vsel %vm557, %v1003, 0
        %v1051 = vsel %vm557, %v1004, 0
        %v1054 = vsel %vm557, %v1005, 0
        %v1057 = vsel %vm557, %v1006, 0
        %1059 = vmatprep.subr.mxu0 0.0
        %1060 = vmatpush1.msra.mxu0 0.0
        %1061 = vmatprep.subr.mxu0 0.0
        %1062 = vmatpush1.msra.mxu0 0.0
        %1063 = vmatprep.subr.mxu0 0.0
        %1064 = vmatpush1.msra.mxu0 0.0
        %1065 = vmatprep.subr.mxu0 0.0
        %1066 = vmatpush1.msra.mxu0 0.0
        %1067 = vmatprep.subr.mxu0 0.0
        %1068 = vmatpush1.msra.mxu0 0.0
        %1069 = vmatprep.subr.mxu0 0.0
        %1070 = vmatpush1.msra.mxu0 0.0
        %1071 = vmatprep.subr.mxu0 0.0
        %1072 = vmatpush1.msra.mxu0 0.0
        %1073 = vmatprep.subr.mxu0 0.0
        %1074 = vmatpush1.msra.mxu0 0.0
        %1075 = vmatprep.subr.mxu0 0.0
        %1076 = vmatpush1.msra.mxu0 0.0
        %1077 = vmatprep.subr.mxu0 0.0
        %1078 = vmatpush1.msra.mxu0 0.0
        %1079 = vmatprep.subr.mxu0 0.0
        %1080 = vmatpush1.msra.mxu0 0.0
        %1081 = vmatprep.subr.mxu0 0.0
        %1082 = vmatpush1.msra.mxu0 0.0
        %1083 = vmatprep.subr.mxu0 0.0
        %1084 = vmatpush1.msra.mxu0 %v1010
        %1085 = vmatprep.subr.mxu0 0.0
        %1086 = vmatpush1.msra.mxu0 %v1009
        %1087 = vmatprep.subr.mxu0 0.0
        %1088 = vmatpush1.msra.mxu0 %v1008
        %1089 = vmatprep.subr.mxu0 0.0
        %1090 = vmatpush1.msra.mxu0 %v1007
        %1091 = vmatprep.subr.mxu0 0.0
        %1092 = vmatpush2.msra.mxu0 0.0
        %1093 = vmatprep.subr.mxu0 0.0
        %1094 = vmatpush2.msra.mxu0 0.0
        %1095 = vmatprep.subr.mxu0 0.0
        %1096 = vmatpush2.msra.mxu0 0.0
        %1097 = vmatprep.subr.mxu0 0.0
        %1098 = vmatpush2.msra.mxu0 0.0
        %1099 = vmatprep.subr.mxu0 0.0
        %1100 = vmatpush2.msra.mxu0 0.0
        %1101 = vmatprep.subr.mxu0 0.0
        %1102 = vmatpush2.msra.mxu0 0.0
        %1103 = vmatprep.subr.mxu0 0.0
        %1104 = vmatpush2.msra.mxu0 0.0
        %1105 = vmatprep.subr.mxu0 0.0
        %1106 = vmatpush2.msra.mxu0 0.0
        %1107 = vmatprep.subr.mxu0 0.0
        %1108 = vmatpush2.msra.mxu0 0.0
        %1109 = vmatprep.subr.mxu0 0.0
        %1110 = vmatpush2.msra.mxu0 0.0
        %1111 = vmatprep.subr.mxu0 0.0
        %1112 = vmatpush2.msra.mxu0 0.0
        %1113 = vmatprep.subr.mxu0 0.0
        %1114 = vmatpush2.msra.mxu0 0.0
        %1115 = vmatprep.subr.mxu0 0.0
        %1116 = vmatpush2.msra.mxu0 0.0
        %1117 = vmatprep.subr.mxu0 0.0
        %1118 = vmatpush2.msra.mxu0 0.0
        %1119 = vmatprep.subr.mxu0 0.0
        %1120 = vmatpush2.msra.mxu0 0.0
        %1121 = vmatprep.subr.mxu0 0.0
        %1122 = vmatpush2.msra.mxu0 0.0
        %1123 = vmatprep.mubr.f32.mxu0 0.0
        %1124 = vmatmul.mubr.f32.gmra.mxu0 %v1012
        %v1125 = vpop.f32.mrf.mxu0
        %v1126 = vadd.f32 0.0, %v1125
        %v1127 = vpop.f32.mrf.mxu0
        %1128 = vmatprep.mubr.f32.mxu0 0.0
        %1129 = vmatmul.mubr.f32.gmra.mxu0 %v1015
        %v1130 = vpop.f32.mrf.mxu0
        %v1131 = vadd.f32 0.0, %v1130
        %v1132 = vpop.f32.mrf.mxu0
        %1133 = vmatprep.mubr.f32.mxu0 0.0
        %1134 = vmatmul.mubr.f32.gmra.mxu0 %v1018
        %v1135 = vpop.f32.mrf.mxu0
        %v1136 = vadd.f32 0.0, %v1135
        %v1137 = vpop.f32.mrf.mxu0
        %1138 = vmatprep.mubr.f32.mxu0 0.0
        %1139 = vmatmul.mubr.f32.gmra.mxu0 %v1021
        %v1140 = vpop.f32.mrf.mxu0
        %v1141 = vadd.f32 0.0, %v1140
        %v1142 = vpop.f32.mrf.mxu0
        %1143 = vmatprep.mubr.f32.mxu0 0.0
        %1144 = vmatmul.mubr.f32.gmra.mxu0 %v1024
        %v1145 = vpop.f32.mrf.mxu0
        %v1146 = vadd.f32 0.0, %v1145
        %v1147 = vpop.f32.mrf.mxu0
        %1148 = vmatprep.mubr.f32.mxu0 0.0
        %1149 = vmatmul.mubr.f32.gmra.mxu0 %v1027
        %v1150 = vpop.f32.mrf.mxu0
        %v1151 = vadd.f32 0.0, %v1150
        %v1152 = vpop.f32.mrf.mxu0
        %1153 = vmatprep.mubr.f32.mxu0 0.0
        %1154 = vmatmul.mubr.f32.gmra.mxu0 %v1030
        %v1155 = vpop.f32.mrf.mxu0
        %v1156 = vadd.f32 0.0, %v1155
        %v1157 = vpop.f32.mrf.mxu0
        %1158 = vmatprep.mubr.f32.mxu0 0.0
        %1159 = vmatmul.mubr.f32.gmra.mxu0 %v1033
        %v1160 = vpop.f32.mrf.mxu0
        %v1161 = vadd.f32 0.0, %v1160
        %v1162 = vpop.f32.mrf.mxu0
        %1163 = vmatprep.mubr.f32.mxu0 0.0
        %1164 = vmatmul.mubr.f32.gmra.mxu0 %v1036
        %v1165 = vpop.f32.mrf.mxu0
        %v1166 = vadd.f32 0.0, %v1165
        %v1167 = vpop.f32.mrf.mxu0
        %1168 = vmatprep.mubr.f32.mxu0 0.0
        %1169 = vmatmul.mubr.f32.gmra.mxu0 %v1039
        %v1170 = vpop.f32.mrf.mxu0
        %v1171 = vadd.f32 0.0, %v1170
        %v1172 = vpop.f32.mrf.mxu0
        %1173 = vmatprep.mubr.f32.mxu0 0.0
        %1174 = vmatmul.mubr.f32.gmra.mxu0 %v1042
        %v1175 = vpop.f32.mrf.mxu0
        %v1176 = vadd.f32 0.0, %v1175
        %v1177 = vpop.f32.mrf.mxu0
        %1178 = vmatprep.mubr.f32.mxu0 0.0
        %1179 = vmatmul.mubr.f32.gmra.mxu0 %v1045
        %v1180 = vpop.f32.mrf.mxu0
        %v1181 = vadd.f32 0.0, %v1180
        %v1182 = vpop.f32.mrf.mxu0
        %1183 = vmatprep.mubr.f32.mxu0 0.0
        %1184 = vmatmul.mubr.f32.gmra.mxu0 %v1048
        %v1185 = vpop.f32.mrf.mxu0
        %v1186 = vadd.f32 0.0, %v1185
        %v1187 = vpop.f32.mrf.mxu0
        %1188 = vmatprep.mubr.f32.mxu0 0.0
        %1189 = vmatmul.mubr.f32.gmra.mxu0 %v1051
        %v1190 = vpop.f32.mrf.mxu0
        %v1191 = vadd.f32 0.0, %v1190
        %v1192 = vpop.f32.mrf.mxu0
        %1193 = vmatprep.mubr.f32.mxu0 0.0
        %1194 = vmatmul.mubr.f32.gmra.mxu0 %v1054
        %v1195 = vpop.f32.mrf.mxu0
        %v1196 = vadd.f32 0.0, %v1195
        %v1197 = vpop.f32.mrf.mxu0
        %1198 = vmatprep.mubr.f32.mxu0 0.0
        %1199 = vmatmul.mubr.f32.gmra.mxu0 %v1057
        %v1200 = vpop.f32.mrf.mxu0
        %v1201 = vadd.f32 0.0, %v1200
        %v1202 = vpop.f32.mrf.mxu0
        %1203 = vdwg.mxu0
        %v1204 = vmul.f32 %v975, %v1126
        %v1205 = vmul.f32 %v976, %v1131
        %v1206 = vmul.f32 %v977, %v1136
        %v1207 = vmul.f32 %v978, %v1141
        %v1208 = vmul.f32 %v979, %v1146
        %v1209 = vmul.f32 %v980, %v1151
        %v1210 = vmul.f32 %v981, %v1156
        %v1211 = vmul.f32 %v982, %v1161
        %v1212 = vmul.f32 %v983, %v1166
        %v1213 = vmul.f32 %v984, %v1171
        %v1214 = vmul.f32 %v985, %v1176
        %v1215 = vmul.f32 %v986, %v1181
        %v1216 = vmul.f32 %v987, %v1186
        %v1217 = vmul.f32 %v988, %v1191
        %v1218 = vmul.f32 %v989, %v1196
        %v1219 = vmul.f32 %v990, %v1201
        %v1220 = vsub.f32 %v673, %v1204
        %v1221 = vsub.f32 %v679, %v1205
        %v1222 = vsub.f32 %v685, %v1206
        %v1223 = vsub.f32 %v691, %v1207
        %v1224 = vsub.f32 %v697, %v1208
        %v1225 = vsub.f32 %v703, %v1209
        %v1226 = vsub.f32 %v709, %v1210
        %v1227 = vsub.f32 %v715, %v1211
        %v1228 = vsub.f32 %v721, %v1212
        %v1229 = vsub.f32 %v727, %v1213
        %v1230 = vsub.f32 %v733, %v1214
        %v1231 = vsub.f32 %v739, %v1215
        %v1232 = vsub.f32 %v745, %v1216
        %v1233 = vsub.f32 %v751, %v1217
        %v1234 = vsub.f32 %v757, %v1218
        %v1235 = vsub.f32 %v763, %v1219
        %v1236 = vld [vmem:[%s5] sm:$0xff]
        %v1237 = vld [vmem:[%s5 + $0x8] sm:$0xff]
        %v1238 = vld [vmem:[%s5 + $0x10] sm:$0xff]
        %v1239 = vld [vmem:[%s5 + $0x18] sm:$0xff]
        %v1240 = vld [vmem:[%s5 + $0x20] sm:$0xff]
        %v1241 = vld [vmem:[%s5 + $0x28] sm:$0xff]
        %v1242 = vld [vmem:[%s5 + $0x30] sm:$0xff]
        %v1243 = vld [vmem:[%s5 + $0x38] sm:$0xff]
        %v1244 = vld [vmem:[%s5 + $0x40] sm:$0xff]
        %v1245 = vld [vmem:[%s5 + $0x48] sm:$0xff]
        %v1246 = vld [vmem:[%s5 + $0x50] sm:$0xff]
        %v1247 = vld [vmem:[%s5 + $0x58] sm:$0xff]
        %v1248 = vld [vmem:[%s5 + $0x60] sm:$0xff]
        %v1249 = vld [vmem:[%s5 + $0x68] sm:$0xff]
        %v1250 = vld [vmem:[%s5 + $0x70] sm:$0xff]
        %v1251 = vld [vmem:[%s5 + $0x78] sm:$0xff]
        %v1252 = vld [vmem:[%s6] sm:$0x1]
        %v1254 = vlaneseq
        %v1255 = vshrl.u32 %v1254, 7
        %v1256 = vsub.s32 0, %v1255
        %v1257 = vrot.slane %v1252, %v1256
        %1259 = vmatprep.subr.mxu0 0.0
        %1260 = vmatpush1.msra.mxu0 %v1251
        %1261 = vmatprep.subr.mxu0 0.0
        %1262 = vmatpush1.msra.mxu0 %v1250
        %1263 = vmatprep.subr.mxu0 0.0
        %1264 = vmatpush1.msra.mxu0 %v1249
        %1265 = vmatprep.subr.mxu0 0.0
        %1266 = vmatpush1.msra.mxu0 %v1248
        %1267 = vmatprep.subr.mxu0 0.0
        %1268 = vmatpush1.msra.mxu0 %v1247
        %1269 = vmatprep.subr.mxu0 0.0
        %1270 = vmatpush1.msra.mxu0 %v1246
        %1271 = vmatprep.subr.mxu0 0.0
        %1272 = vmatpush1.msra.mxu0 %v1245
        %1273 = vmatprep.subr.mxu0 0.0
        %1274 = vmatpush1.msra.mxu0 %v1244
        %1275 = vmatprep.subr.mxu0 0.0
        %1276 = vmatpush1.msra.mxu0 %v1243
        %1277 = vmatprep.subr.mxu0 0.0
        %1278 = vmatpush1.msra.mxu0 %v1242
        %1279 = vmatprep.subr.mxu0 0.0
        %1280 = vmatpush1.msra.mxu0 %v1241
        %1281 = vmatprep.subr.mxu0 0.0
        %1282 = vmatpush1.msra.mxu0 %v1240
        %1283 = vmatprep.subr.mxu0 0.0
        %1284 = vmatpush1.msra.mxu0 %v1239
        %1285 = vmatprep.subr.mxu0 0.0
        %1286 = vmatpush1.msra.mxu0 %v1238
        %1287 = vmatprep.subr.mxu0 0.0
        %1288 = vmatpush1.msra.mxu0 %v1237
        %1289 = vmatprep.subr.mxu0 0.0
        %1290 = vmatpush1.msra.mxu0 %v1236
        %1291 = vmatprep.subr.mxu0 0.0
        %1292 = vmatpush2.msra.mxu0 0.0
        %1293 = vmatprep.subr.mxu0 0.0
        %1294 = vmatpush2.msra.mxu0 0.0
        %1295 = vmatprep.subr.mxu0 0.0
        %1296 = vmatpush2.msra.mxu0 0.0
        %1297 = vmatprep.subr.mxu0 0.0
        %1298 = vmatpush2.msra.mxu0 0.0
        %1299 = vmatprep.subr.mxu0 0.0
        %1300 = vmatpush2.msra.mxu0 0.0
        %1301 = vmatprep.subr.mxu0 0.0
        %1302 = vmatpush2.msra.mxu0 0.0
        %1303 = vmatprep.subr.mxu0 0.0
        %1304 = vmatpush2.msra.mxu0 0.0
        %1305 = vmatprep.subr.mxu0 0.0
        %1306 = vmatpush2.msra.mxu0 0.0
        %1307 = vmatprep.subr.mxu0 0.0
        %1308 = vmatpush2.msra.mxu0 0.0
        %1309 = vmatprep.subr.mxu0 0.0
        %1310 = vmatpush2.msra.mxu0 0.0
        %1311 = vmatprep.subr.mxu0 0.0
        %1312 = vmatpush2.msra.mxu0 0.0
        %1313 = vmatprep.subr.mxu0 0.0
        %1314 = vmatpush2.msra.mxu0 0.0
        %1315 = vmatprep.subr.mxu0 0.0
        %1316 = vmatpush2.msra.mxu0 0.0
        %1317 = vmatprep.subr.mxu0 0.0
        %1318 = vmatpush2.msra.mxu0 0.0
        %1319 = vmatprep.subr.mxu0 0.0
        %1320 = vmatpush2.msra.mxu0 0.0
        %1321 = vmatprep.subr.mxu0 0.0
        %1322 = vmatpush2.msra.mxu0 0.0
        %1323 = vmatprep.mubr.f32.mxu0 0.0
        %1324 = vmatmul.mubr.f32.gmra.mxu0 %v1220
        %v1325 = vpop.f32.mrf.mxu0
        %v1326 = vadd.f32 %v1257, %v1325
        %v1327 = vpop.f32.mrf.mxu0
        %1328 = vmatprep.mubr.f32.mxu0 0.0
        %1329 = vmatmul.mubr.f32.gmra.mxu0 %v1221
        %v1330 = vpop.f32.mrf.mxu0
        %v1331 = vadd.f32 %v1257, %v1330
        %v1332 = vpop.f32.mrf.mxu0
        %1333 = vmatprep.mubr.f32.mxu0 0.0
        %1334 = vmatmul.mubr.f32.gmra.mxu0 %v1222
        %v1335 = vpop.f32.mrf.mxu0
        %v1336 = vadd.f32 %v1257, %v1335
        %v1337 = vpop.f32.mrf.mxu0
        %1338 = vmatprep.mubr.f32.mxu0 0.0
        %1339 = vmatmul.mubr.f32.gmra.mxu0 %v1223
        %v1340 = vpop.f32.mrf.mxu0
        %v1341 = vadd.f32 %v1257, %v1340
        %v1342 = vpop.f32.mrf.mxu0
        %1343 = vmatprep.mubr.f32.mxu0 0.0
        %1344 = vmatmul.mubr.f32.gmra.mxu0 %v1224
        %v1345 = vpop.f32.mrf.mxu0
        %v1346 = vadd.f32 %v1257, %v1345
        %v1347 = vpop.f32.mrf.mxu0
        %1348 = vmatprep.mubr.f32.mxu0 0.0
        %1349 = vmatmul.mubr.f32.gmra.mxu0 %v1225
        %v1350 = vpop.f32.mrf.mxu0
        %v1351 = vadd.f32 %v1257, %v1350
        %v1352 = vpop.f32.mrf.mxu0
        %1353 = vmatprep.mubr.f32.mxu0 0.0
        %1354 = vmatmul.mubr.f32.gmra.mxu0 %v1226
        %v1355 = vpop.f32.mrf.mxu0
        %v1356 = vadd.f32 %v1257, %v1355
        %v1357 = vpop.f32.mrf.mxu0
        %1358 = vmatprep.mubr.f32.mxu0 0.0
        %1359 = vmatmul.mubr.f32.gmra.mxu0 %v1227
        %v1360 = vpop.f32.mrf.mxu0
        %v1361 = vadd.f32 %v1257, %v1360
        %v1362 = vpop.f32.mrf.mxu0
        %1363 = vmatprep.mubr.f32.mxu0 0.0
        %1364 = vmatmul.mubr.f32.gmra.mxu0 %v1228
        %v1365 = vpop.f32.mrf.mxu0
        %v1366 = vadd.f32 %v1257, %v1365
        %v1367 = vpop.f32.mrf.mxu0
        %1368 = vmatprep.mubr.f32.mxu0 0.0
        %1369 = vmatmul.mubr.f32.gmra.mxu0 %v1229
        %v1370 = vpop.f32.mrf.mxu0
        %v1371 = vadd.f32 %v1257, %v1370
        %v1372 = vpop.f32.mrf.mxu0
        %1373 = vmatprep.mubr.f32.mxu0 0.0
        %1374 = vmatmul.mubr.f32.gmra.mxu0 %v1230
        %v1375 = vpop.f32.mrf.mxu0
        %v1376 = vadd.f32 %v1257, %v1375
        %v1377 = vpop.f32.mrf.mxu0
        %1378 = vmatprep.mubr.f32.mxu0 0.0
        %1379 = vmatmul.mubr.f32.gmra.mxu0 %v1231
        %v1380 = vpop.f32.mrf.mxu0
        %v1381 = vadd.f32 %v1257, %v1380
        %v1382 = vpop.f32.mrf.mxu0
        %1383 = vmatprep.mubr.f32.mxu0 0.0
        %1384 = vmatmul.mubr.f32.gmra.mxu0 %v1232
        %v1385 = vpop.f32.mrf.mxu0
        %v1386 = vadd.f32 %v1257, %v1385
        %v1387 = vpop.f32.mrf.mxu0
        %1388 = vmatprep.mubr.f32.mxu0 0.0
        %1389 = vmatmul.mubr.f32.gmra.mxu0 %v1233
        %v1390 = vpop.f32.mrf.mxu0
        %v1391 = vadd.f32 %v1257, %v1390
        %v1392 = vpop.f32.mrf.mxu0
        %1393 = vmatprep.mubr.f32.mxu0 0.0
        %1394 = vmatmul.mubr.f32.gmra.mxu0 %v1234
        %v1395 = vpop.f32.mrf.mxu0
        %v1396 = vadd.f32 %v1257, %v1395
        %v1397 = vpop.f32.mrf.mxu0
        %1398 = vmatprep.mubr.f32.mxu0 0.0
        %1399 = vmatmul.mubr.f32.gmra.mxu0 %v1235
        %v1400 = vpop.f32.mrf.mxu0
        %v1401 = vadd.f32 %v1257, %v1400
        %v1402 = vpop.f32.mrf.mxu0
        %1403 = vdwg.mxu0
        %v1404 = vsub.f32 0.0, %v1326
        %v1405 = vsub.f32 0.0, %v1331
        %v1406 = vsub.f32 0.0, %v1336
        %v1407 = vsub.f32 0.0, %v1341
        %v1408 = vsub.f32 0.0, %v1346
        %v1409 = vsub.f32 0.0, %v1351
        %v1410 = vsub.f32 0.0, %v1356
        %v1411 = vsub.f32 0.0, %v1361
        %v1412 = vsub.f32 0.0, %v1366
        %v1413 = vsub.f32 0.0, %v1371
        %v1414 = vsub.f32 0.0, %v1376
        %v1415 = vsub.f32 0.0, %v1381
        %v1416 = vsub.f32 0.0, %v1386
        %v1417 = vsub.f32 0.0, %v1391
        %v1418 = vsub.f32 0.0, %v1396
        %v1419 = vsub.f32 0.0, %v1401
        %v1420 = vmul.f32 %v1404, 1.442695
        %v1421 = vpow.pop %v1420
        %v1422 = vmul.f32 %v1405, 1.442695
        %v1423 = vpow.pop %v1422
        %v1424 = vmul.f32 %v1406, 1.442695
        %v1425 = vpow.pop %v1424
        %v1426 = vmul.f32 %v1407, 1.442695
        %v1427 = vpow.pop %v1426
        %v1428 = vmul.f32 %v1408, 1.442695
        %v1429 = vpow.pop %v1428
        %v1430 = vmul.f32 %v1409, 1.442695
        %v1431 = vpow.pop %v1430
        %v1432 = vmul.f32 %v1410, 1.442695
        %v1433 = vpow.pop %v1432
        %v1434 = vmul.f32 %v1411, 1.442695
        %v1435 = vpow.pop %v1434
        %v1436 = vmul.f32 %v1412, 1.442695
        %v1437 = vpow.pop %v1436
        %v1438 = vmul.f32 %v1413, 1.442695
        %v1439 = vpow.pop %v1438
        %v1440 = vmul.f32 %v1414, 1.442695
        %v1441 = vpow.pop %v1440
        %v1442 = vmul.f32 %v1415, 1.442695
        %v1443 = vpow.pop %v1442
        %v1444 = vmul.f32 %v1416, 1.442695
        %v1445 = vpow.pop %v1444
        %v1446 = vmul.f32 %v1417, 1.442695
        %v1447 = vpow.pop %v1446
        %v1448 = vmul.f32 %v1418, 1.442695
        %v1449 = vpow.pop %v1448
        %v1450 = vmul.f32 %v1419, 1.442695
        %v1451 = vpow.pop %v1450
        %v1452 = vadd.f32 %v1421, 1.0
        %v1453 = vadd.f32 %v1423, 1.0
        %v1454 = vadd.f32 %v1425, 1.0
        %v1455 = vadd.f32 %v1427, 1.0
        %v1456 = vadd.f32 %v1429, 1.0
        %v1457 = vadd.f32 %v1431, 1.0
        %v1458 = vadd.f32 %v1433, 1.0
        %v1459 = vadd.f32 %v1435, 1.0
        %v1460 = vadd.f32 %v1437, 1.0
        %v1461 = vadd.f32 %v1439, 1.0
        %v1462 = vadd.f32 %v1441, 1.0
        %v1463 = vadd.f32 %v1443, 1.0
        %v1464 = vadd.f32 %v1445, 1.0
        %v1465 = vadd.f32 %v1447, 1.0
        %v1466 = vadd.f32 %v1449, 1.0
        %v1467 = vadd.f32 %v1451, 1.0
        %v1468 = vrcp.pop %v1452
        %v1469 = vrcp.pop %v1453
        %v1470 = vrcp.pop %v1454
        %v1471 = vrcp.pop %v1455
        %v1472 = vrcp.pop %v1456
        %v1473 = vrcp.pop %v1457
        %v1474 = vrcp.pop %v1458
        %v1475 = vrcp.pop %v1459
        %v1476 = vrcp.pop %v1460
        %v1477 = vrcp.pop %v1461
        %v1478 = vrcp.pop %v1462
        %v1479 = vrcp.pop %v1463
        %v1480 = vrcp.pop %v1464
        %v1481 = vrcp.pop %v1465
        %v1482 = vrcp.pop %v1466
        %v1483 = vrcp.pop %v1467
        %1484 = vst [vmem:[%s334] sm:$0xff] %v1220
        %1485 = vst [vmem:[%s334 + $0x8] sm:$0xff] %v1221
        %1486 = vst [vmem:[%s334 + $0x10] sm:$0xff] %v1222
        %1487 = vst [vmem:[%s334 + $0x18] sm:$0xff] %v1223
        %1488 = vst [vmem:[%s334 + $0x20] sm:$0xff] %v1224
        %1489 = vst [vmem:[%s334 + $0x28] sm:$0xff] %v1225
        %1490 = vst [vmem:[%s334 + $0x30] sm:$0xff] %v1226
        %1491 = vst [vmem:[%s334 + $0x38] sm:$0xff] %v1227
        %1492 = vst [vmem:[%s334 + $0x40] sm:$0xff] %v1228
        %1493 = vst [vmem:[%s334 + $0x48] sm:$0xff] %v1229
        %1494 = vst [vmem:[%s334 + $0x50] sm:$0xff] %v1230
        %1495 = vst [vmem:[%s334 + $0x58] sm:$0xff] %v1231
        %1496 = vst [vmem:[%s334 + $0x60] sm:$0xff] %v1232
        %1497 = vst [vmem:[%s334 + $0x68] sm:$0xff] %v1233
        %1498 = vst [vmem:[%s334 + $0x70] sm:$0xff] %v1234
        %1499 = vst [vmem:[%s334 + $0x78] sm:$0xff] %v1235
        %1500 = vst [vmem:[%s341] sm:$0xff] %v1468
        %1501 = vst [vmem:[%s341 + $0x8] sm:$0xff] %v1469
        %1502 = vst [vmem:[%s341 + $0x10] sm:$0xff] %v1470
        %1503 = vst [vmem:[%s341 + $0x18] sm:$0xff] %v1471
        %1504 = vst [vmem:[%s341 + $0x20] sm:$0xff] %v1472
        %1505 = vst [vmem:[%s341 + $0x28] sm:$0xff] %v1473
        %1506 = vst [vmem:[%s341 + $0x30] sm:$0xff] %v1474
        %1507 = vst [vmem:[%s341 + $0x38] sm:$0xff] %v1475
        %1508 = vst [vmem:[%s341 + $0x40] sm:$0xff] %v1476
        %1509 = vst [vmem:[%s341 + $0x48] sm:$0xff] %v1477
        %1510 = vst [vmem:[%s341 + $0x50] sm:$0xff] %v1478
        %1511 = vst [vmem:[%s341 + $0x58] sm:$0xff] %v1479
        %1512 = vst [vmem:[%s341 + $0x60] sm:$0xff] %v1480
        %1513 = vst [vmem:[%s341 + $0x68] sm:$0xff] %v1481
        %1514 = vst [vmem:[%s341 + $0x70] sm:$0xff] %v1482
        %1515 = vst [vmem:[%s341 + $0x78] sm:$0xff] %v1483
        %s1516 = sand.u32 %s192, 1
        %s1517 = scalar_lea.sflag [#allocation4], %s1516
        %s1518 = sand.u32 %s192, 1
        %s1519 = smul.addr %s1518, 128
        %s1520 = scalar_lea.vmem [#allocation5], %s1519
        %s1521 = sand.u32 %s218, 1
        %s1522 = scalar_lea.sflag [#allocation7], %s1521
        %s1523 = sand.u32 %s218, 1
        %s1524 = smul.addr %s1523, 128
        %s1525 = scalar_lea.vmem [#allocation6], %s1524
        // Predicated region
        $region53: #{tpu_custom_call.1} parent=47 // pred_check
          %p1526 = pneg %p202
        $region54: #{tpu_custom_call.1} parent=47 // pred_check_branch
          %1528 = sbr.rel (%p1526) target = $region56
        $region55: #{tpu_custom_call.1} parent=47 // pred_region
          %s1529 = smul.u32 16, %s27
          %s1531 = ssub.s32 2048, 2048
          %1532 = vsyncadd %s1517, %s1531
          %s1533 = smul.addr %s1529, 128
          %s1534 = scalar_lea.hbm %s7, %s1533
          %s1535 = sshll.u32 %s1520, 4
          %s1536 = int_to_ptr.vmem [resolvable:$true] %s1535
          %1541 = dma.vmem_to_hbm [thread:$0]  %s1536, 2048, %s1534, %s1517, 128, 128, 8
        $region56: #{tpu_custom_call.1} parent=47 // pred_fallthru
          _
        // Predicated region
        $region57: #{tpu_custom_call.1} parent=47 // pred_check
          %p1542 = pneg %p228
        $region58: #{tpu_custom_call.1} parent=47 // pred_check_branch
          %1544 = sbr.rel (%p1542) target = $region60
        $region59: #{tpu_custom_call.1} parent=47 // pred_region
          %s1545 = smul.u32 16, %s27
          %s1547 = ssub.s32 2048, 2048
          %1548 = vsyncadd %s1522, %s1547
          %s1549 = smul.addr %s1545, 128
          %s1550 = scalar_lea.hbm %s8, %s1549
          %s1551 = sshll.u32 %s1525, 4
          %s1552 = int_to_ptr.vmem [resolvable:$true] %s1551
          %1557 = dma.vmem_to_hbm [thread:$0]  %s1552, 2048, %s1550, %s1522, 128, 128, 8
        $region60: #{tpu_custom_call.1} parent=47 // pred_fallthru
          _
      $region48: #{tpu_custom_call.1} parent=5 // pred_fallthru
        _
      %p1558 = scmp.le.s32.totalorder 2, %s22
      // Predicated region
      $region61: #{tpu_custom_call.1} parent=5 // pred_check
        %p1559 = pneg %p1558
      $region62: #{tpu_custom_call.1} parent=5 // pred_check_branch
        %1561 = sbr.rel (%p1559) target = $region64
      $region63: #{tpu_custom_call.1} parent=5 // pred_region
        %s1562 = ssub.s32 %s22, 2
        // Predicated region
        $region65: #{tpu_custom_call.1} parent=63 // pred_check
          %p1563 = pneg %p208
        $region66: #{tpu_custom_call.1} parent=63 // pred_check_branch
          %1565 = sbr.rel (%p1563) target = $region68
        $region67: #{tpu_custom_call.1} parent=63 // pred_region
          %s1566 = sand.u32 %s193, 1
          %s1567 = scalar_lea.sflag [#allocation4], %s1566
          %s1568 = sand.u32 %s193, 1
          %s1569 = smul.addr %s1568, 128
          %s1570 = scalar_lea.vmem [#allocation5], %s1569
          %1571 = dma.done %s1567, 2048
        $region68: #{tpu_custom_call.1} parent=63 // pred_fallthru
          _
        // Predicated region
        $region69: #{tpu_custom_call.1} parent=63 // pred_check
          %p1572 = pneg %p234
        $region70: #{tpu_custom_call.1} parent=63 // pred_check_branch
          %1574 = sbr.rel (%p1572) target = $region72
        $region71: #{tpu_custom_call.1} parent=63 // pred_region
          %s1575 = sand.u32 %s219, 1
          %s1576 = scalar_lea.sflag [#allocation7], %s1575
          %s1577 = sand.u32 %s219, 1
          %s1578 = smul.addr %s1577, 128
          %s1579 = scalar_lea.vmem [#allocation6], %s1578
          %1580 = dma.done %s1576, 2048
        $region72: #{tpu_custom_call.1} parent=63 // pred_fallthru
          _
      $region64: #{tpu_custom_call.1} parent=5 // pred_fallthru
        _
    $region6: #{tpu_custom_call.1} parent=1 // loop_footer
      %s26 = sadd.s32 1, %s22
    $region7: #{tpu_custom_call.1} parent=1 // loop_footer_branch
      %21 = sbr.rel target = $region3
    $region8: #{tpu_custom_call.1} parent=1 // loop_exit
      _
    %1581 = vsyncpa [#allocation3], 1
    %s1582 = scalar_lea.sflag [#allocation3], 1
    %1583 = vsyncpa %s1582, 1
    %1584 = vsyncpa [#allocation4], 1
    %s1585 = scalar_lea.sflag [#allocation4], 1
    %1586 = vsyncpa %s1585, 1
    %1587 = vsyncpa [#allocation7], 1
    %s1588 = scalar_lea.sflag [#allocation7], 1
    %1589 = vsyncpa %s1588, 1

</llo_original>
